<compile_context>
chip_gen: v7x
topology: tpu7x:2x2x1
jax: 0.10.0
libtpu: 0.0.40
codegen_flags: <defaults>
</compile_context>

<pallas_src>
import functools

import jax
import jax.numpy as jnp
from jax.experimental import pallas as pl
from jax.experimental.pallas import tpu as pltpu


def _round_up(a, b):
    return (a + b - 1) // b * b


def _vmem_capacity_bytes():
    try:
        cap = getattr(pltpu.get_tpu_info(), "vmem_capacity_bytes", None)
        if cap:
            return int(cap)
    except Exception:
        pass
    return 64 * 1024 * 1024  # conservative fallback (v7x per-TC VMEM)


# ---------------------------------------------------------------------------
# Kernels
# ---------------------------------------------------------------------------
def _linear_kernel(x_ref, w_ref, b_ref, out_ref):
    # out = x @ w + b   (one row-tile of nodes; weights fit a single block)
    out_ref[...] = (
        jnp.dot(x_ref[...], w_ref[...], preferred_element_type=jnp.float32)
        + b_ref[...]
    )


def _appnp_resident_kernel(adj_hbm, h_ref, out_ref, adj_vmem, z_buf, dma_sem,
                           *, alpha, apply_relu, tm):
    # All K steps of  z <- A_p @ z + alpha * h  with A_p resident in VMEM.
    #   grid = (K, n_pad // tm), fully sequential.
    #   A_p = (1 - alpha) * A_hat, bf16, DMA'd from HBM exactly once.
    #   z ping-pongs between z_buf[0] / z_buf[1] (bf16) entirely inside VMEM.
    s = pl.program_id(0)            # power-iteration step
    i = pl.program_id(1)            # row stripe
    nsteps = pl.num_programs(0)

    @pl.when((s == 0) & (i == 0))
    def _():
        cp = pltpu.make_async_copy(adj_hbm, adj_vmem, dma_sem)
        cp.start()
        cp.wait()
        z_buf[0] = h_ref[...].astype(jnp.bfloat16)   # z_0 = h

    cur = s & 1
    row = pl.multiple_of(i * tm, tm)

    acc = jnp.dot(adj_vmem[pl.ds(row, tm), :], z_buf[cur],
                  preferred_element_type=jnp.float32)     # f32 accumulation
    y = acc + alpha * h_ref[pl.ds(row, tm), :]            # teleport term, f32

    z_buf[1 - cur, pl.ds(row, tm), :] = y.astype(jnp.bfloat16)

    @pl.when(s == nsteps - 1)
    def _():
        out_ref[pl.ds(row, tm), :] = jnp.maximum(y, 0.0) if apply_relu else y


def _appnp_streamed_kernel(adj_ref, h_ref, out_ref, z_buf, acc_ref,
                           *, alpha, apply_relu, tm, tk):
    # Fallback for graphs whose adjacency does not fit VMEM: the bf16 adjacency
    # is streamed tile-by-tile by the BlockSpec pipeline (re-read each step);
    # z still ping-pongs inside VMEM so only the adjacency touches HBM per step.
    s = pl.program_id(0)
    i = pl.program_id(1)
    k = pl.program_id(2)
    nsteps = pl.num_programs(0)
    nk = pl.num_programs(2)

    @pl.when((s == 0) & (i == 0) & (k == 0))
    def _():
        z_buf[0] = h_ref[...].astype(jnp.bfloat16)

    @pl.when(k == 0)
    def _():
        acc_ref[...] = jnp.zeros_like(acc_ref)

    cur = s & 1
    col = pl.multiple_of(k * tk, tk)
    acc_ref[...] += jnp.dot(adj_ref[...], z_buf[cur, pl.ds(col, tk), :],
                            preferred_element_type=jnp.float32)

    @pl.when(k == nk - 1)
    def _():
        row = pl.multiple_of(i * tm, tm)
        y = acc_ref[...] + alpha * h_ref[pl.ds(row, tm), :]
        z_buf[1 - cur, pl.ds(row, tm), :] = y.astype(jnp.bfloat16)

        @pl.when(s == nsteps - 1)
        def _():
            out_ref[pl.ds(row, tm), :] = jnp.maximum(y, 0.0) if apply_relu else y


# ---------------------------------------------------------------------------
# pallas_call wrappers
# ---------------------------------------------------------------------------
def _linear(x, w, b, *, tm, vmem_limit):
    n, fin = x.shape
    fout = w.shape[1]
    return pl.pallas_call(
        _linear_kernel,
        out_shape=jax.ShapeDtypeStruct((n, fout), jnp.float32),
        grid=(n // tm,),
        in_specs=[
            pl.BlockSpec((tm, fin), lambda i: (i, 0)),
            pl.BlockSpec((fin, fout), lambda i: (0, 0)),
            pl.BlockSpec((1, fout), lambda i: (0, 0)),
        ],
        out_specs=pl.BlockSpec((tm, fout), lambda i: (i, 0)),
        compiler_params=pltpu.CompilerParams(
            dimension_semantics=("parallel",),
            vmem_limit_bytes=vmem_limit,
        ),
    )(x, w, b)


def _appnp_block(adj_p, h, *, K, alpha, apply_relu, tm, vmem_cap):
    # One fused pallas_call for all K power-iteration steps of an APPNP block.
    n_pad = adj_p.shape[0]
    f = h.shape[1]
    vmem_limit = int(0.9 * vmem_cap)

    # Resident-path VMEM estimate: 1x adjacency (single manual DMA), bf16 z
    # ping-pong, double-buffered h/out pipeline blocks (f32), plus the
    # per-stripe matmul operand temporaries.  Gate at 70% of physical VMEM so
    # the same code stays legal on v7x's 64 MiB as well as v5e/v6e's 128 MiB.
    resident_bytes = (
        n_pad * n_pad * 2
        + 2 * n_pad * f * 2
        + 4 * n_pad * f * 4
        + 2 * tm * n_pad * 2
        + tm * f * 4
    )
    resident = resident_bytes <= int(0.7 * vmem_cap)

    if resident:
        kernel = functools.partial(
            _appnp_resident_kernel, alpha=alpha, apply_relu=apply_relu, tm=tm)
        cost = pl.CostEstimate(
            flops=2 * K * n_pad * n_pad * f,
            transcendentals=0,
            bytes_accessed=n_pad * n_pad * 2 + 2 * n_pad * f * 4,
        )
        return pl.pallas_call(
            kernel,
            out_shape=jax.ShapeDtypeStruct((n_pad, f), jnp.float32),
            grid=(K, n_pad // tm),
            in_specs=[
                pl.BlockSpec(memory_space=pl.ANY),               # adjacency, raw HBM ref
                pl.BlockSpec((n_pad, f), lambda s, i: (0, 0)),   # h, resident (loaded once)
            ],
            out_specs=pl.BlockSpec((n_pad, f), lambda s, i: (0, 0)),
            scratch_shapes=[
                pltpu.VMEM((n_pad, n_pad), jnp.bfloat16),        # resident (1-a)*A_hat
                pltpu.VMEM((2, n_pad, f), jnp.bfloat16),         # z ping-pong (bf16 carry)
                pltpu.SemaphoreType.DMA(()),
            ],
            compiler_params=pltpu.CompilerParams(
                # z lives in per-core VMEM across steps -> grid must be sequential.
                dimension_semantics=("arbitrary", "arbitrary"),
                vmem_limit_bytes=vmem_limit,
            ),
            cost_estimate=cost,
        )(adj_p, h)

    # ---- streamed fallback: adjacency re-streamed from HBM each step ----
    tk = tm
    kernel = functools.partial(
        _appnp_streamed_kernel, alpha=alpha, apply_relu=apply_relu, tm=tm, tk=tk)
    cost = pl.CostEstimate(
        flops=2 * K * n_pad * n_pad * f,
        transcendentals=0,
        bytes_accessed=K * n_pad * n_pad * 2 + 2 * n_pad * f * 4,
    )
    return pl.pallas_call(
        kernel,
        out_shape=jax.ShapeDtypeStruct((n_pad, f), jnp.float32),
        grid=(K, n_pad // tm, n_pad // tk),
        in_specs=[
            pl.BlockSpec((tm, tk), lambda s, i, k: (i, k),
                         pipeline_mode=pl.Buffered(3)),          # hide DMA bubble
            pl.BlockSpec((n_pad, f), lambda s, i, k: (0, 0)),
        ],
        out_specs=pl.BlockSpec((n_pad, f), lambda s, i, k: (0, 0)),
        scratch_shapes=[
            pltpu.VMEM((2, n_pad, f), jnp.bfloat16),             # z ping-pong
            pltpu.VMEM((tm, f), jnp.float32),                    # row-stripe accumulator
        ],
        compiler_params=pltpu.CompilerParams(
            dimension_semantics=("arbitrary", "arbitrary", "arbitrary"),
            vmem_limit_bytes=vmem_limit,
        ),
        cost_estimate=cost,
    )(adj_p, h)


# ---------------------------------------------------------------------------
# Graph normalization (gcn_norm semantics) + forward
# ---------------------------------------------------------------------------
def _normalized_adjacency(num_nodes, edge_index):
    src, dst = edge_index[0], edge_index[1]
    a = jnp.zeros((num_nodes, num_nodes), jnp.float32).at[dst, src].add(1.0)
    # add_remaining_self_loops: only add a self-loop where none exists.
    missing = jnp.where(jnp.diag(a) > 0.0, 0.0, 1.0)
    a = a + jnp.diag(missing)
    deg = jnp.sum(a, axis=1)               # >= 1 for every node
    dinv = jax.lax.rsqrt(deg)
    return a * dinv[:, None] * dinv[None, :]


def appnp_benx_forward(x, edge_index, params, *, K, alpha, num_mid_layers):
    n, fin = x.shape
    nhid = params["w1"].shape[1]
    out_dim = params["w2"].shape[1]

    # Lane-dense padding: node count and every feature dim padded to x128.
    n_pad = _round_up(n, 128)
    if n_pad % 512 == 0:
        tm = 512
    elif n_pad % 256 == 0:
        tm = 256
    else:
        tm = 128
    fin_pad = _round_up(fin, 128)
    hid_pad = _round_up(nhid, 128)
    out_pad = _round_up(out_dim, 128)

    vmem_cap = _vmem_capacity_bytes()
    vmem_limit = int(0.9 * vmem_cap)

    # Dense normalized adjacency; (1 - alpha) teleport scale hoisted; bf16 for the MXU.
    adj = _normalized_adjacency(n, edge_index)
    adj_p = jnp.pad((1.0 - alpha) * adj,
                    ((0, n_pad - n), (0, n_pad - n))).astype(jnp.bfloat16)

    # Zero-padded operands (padding is exact: padded adjacency rows/cols are zero,
    # padded feature cols are zero, so padding never leaks into real outputs).
    x_p = jnp.pad(x.astype(jnp.float32), ((0, n_pad - n), (0, fin_pad - fin)))
    w1 = jnp.pad(params["w1"].astype(jnp.float32),
                 ((0, fin_pad - fin), (0, hid_pad - nhid)))
    b1 = jnp.pad(params["b1"].astype(jnp.float32).reshape(1, -1),
                 ((0, 0), (0, hid_pad - nhid)))
    w2 = jnp.pad(params["w2"].astype(jnp.float32),
                 ((0, hid_pad - nhid), (0, out_pad - out_dim)))
    b2 = jnp.pad(params["b2"].astype(jnp.float32).reshape(1, -1),
                 ((0, 0), (0, out_pad - out_dim)))

    h = _linear(x_p, w1, b1, tm=tm, vmem_limit=vmem_limit)        # line1
    z = _appnp_block(adj_p, h, K=K, alpha=alpha, apply_relu=True,
                     tm=tm, vmem_cap=vmem_cap)                    # conv1, fused ReLU
    for _ in range(num_mid_layers):                               # convx layers
        # TODO(synk): F.dropout (module default training=True) is stochastic;
        # treated as inference-mode identity here.
        z = _appnp_block(adj_p, z, K=K, alpha=alpha, apply_relu=True,
                         tm=tm, vmem_cap=vmem_cap)                # relu(APPNP(z))
    y = _linear(z, w2, b2, tm=tm, vmem_limit=vmem_limit)          # line2
    out = _appnp_block(adj_p, y, K=K, alpha=alpha, apply_relu=False,
                       tm=tm, vmem_cap=vmem_cap)                  # conv2
    return out[:n, :out_dim]


# ---------------------------------------------------------------------------
# Reference (pure JAX, f32) + synthetic params
# ---------------------------------------------------------------------------
def reference_forward(x, edge_index, params, *, K, alpha, num_mid_layers):
    adj = _normalized_adjacency(x.shape[0], edge_index)

    def appnp(h):
        z = h
        for _ in range(K):
            z = (1.0 - alpha) * (adj @ z) + alpha * h
        return z

    h = x @ params["w1"] + params["b1"]
    z = jnp.maximum(appnp(h), 0.0)
    for _ in range(num_mid_layers):
        z = jnp.maximum(appnp(z), 0.0)
    y = z @ params["w2"] + params["b2"]
    return appnp(y)


def init_params(key, input_dim, nhid, out_dim):
    # Weights stored pre-transposed as [in, out]. (line3 of the PyTorch module is
    # defined but never used in forward(), so it has no counterpart here.)
    ks = jax.random.split(key, 4)
    scale = 0.1
    return {
        "w1": scale * jax.random.normal(ks[0], (input_dim, nhid), jnp.float32),
        "b1": scale * jax.random.normal(ks[1], (nhid,), jnp.float32),
        "w2": scale * jax.random.normal(ks[2], (nhid, out_dim), jnp.float32),
        "b2": scale * jax.random.normal(ks[3], (out_dim,), jnp.float32),
    }


if __name__ == "__main__":
    N = 64
    input_dim = 16
    nhid = 32
    out_dim = 8
    layer = 3
    alpha = 0.1
    K = 10

    key = jax.random.PRNGKey(0)
    kx, kp = jax.random.split(key)
    x = jax.random.normal(kx, (N, input_dim), jnp.float32)

    # Deterministic small graph: undirected ring + chord (i <-> i+3)
    idx = jnp.arange(N, dtype=jnp.int32)
    src = jnp.concatenate([idx, (idx + 1) % N, idx, (idx + 3) % N])
    dst = jnp.concatenate([(idx + 1) % N, idx, (idx + 3) % N, idx])
    edge_index = jnp.stack([src, dst], axis=0)  # [2, E]

    params = init_params(kp, input_dim, nhid, out_dim)

    fwd = jax.jit(functools.partial(appnp_benx_forward, K=K, alpha=alpha,
                                    num_mid_layers=layer - 2))
    out = jax.block_until_ready(fwd(x, edge_index, params))

    assert out.shape == (N, out_dim)
    assert bool(jnp.all(jnp.isfinite(out)))

    ref = reference_forward(x, edge_index, params, K=K, alpha=alpha,
                            num_mid_layers=layer - 2)
    assert bool(jnp.allclose(out, ref, rtol=5e-2, atol=5e-2)), \
        float(jnp.max(jnp.abs(out - ref)))

    print("KERNEL_OK")
</pallas_src>

<mosaic_0001>
module attributes {stable_mosaic.version = 11 : i64} {
  func.func private @main(%arg0: i32) attributes {dimension_semantics = [#tpu.dimension_semantics<core_parallel>], iteration_bounds = array<i64: 2>, tpu.core_type = #tpu.core_type<sc_scalar_subcore>, window_params = []} {
    return
  }
}

module attributes {stable_mosaic.version = 11 : i64} {
  func.func private @main(%arg0: i32) attributes {dimension_semantics = [#tpu.dimension_semantics<core_parallel>], iteration_bounds = array<i64: 2>, tpu.core_type = #tpu.core_type<sc_scalar_subcore>, window_params = []} {
    return
  }
}

module attributes {stable_mosaic.version = 11 : i64} {
  func.func @_linear_kernel(%arg0: i32, %arg1: memref<128x128xf32, #tpu.memory_space<vmem>>, %arg2: memref<128x128xf32, #tpu.memory_space<vmem>>, %arg3: memref<1x128xf32, #tpu.memory_space<vmem>>, %arg4: memref<128x128xf32, #tpu.memory_space<vmem>>) attributes {dimension_semantics = [#tpu.dimension_semantics<parallel>], iteration_bounds = array<i64: 1>, scalar_prefetch = 0 : i64, scratch_operands = 0 : i64, tpu.core_type = #tpu.core_type<tc>, window_params = [{transform_indices = @transform_0, window_bounds = array<i64: 128, 128>}, {pipeline_mode = #tpu.pipeline_mode<synchronous>, transform_indices = @transform_1, window_bounds = array<i64: 128, 128>}, {pipeline_mode = #tpu.pipeline_mode<synchronous>, transform_indices = @transform_2, window_bounds = array<i64: 1, 128>}, {transform_indices = @transform_3, window_bounds = array<i64: 128, 128>}]} {
    %c0 = arith.constant 0 : index
    %c0_0 = arith.constant 0 : index
    %0 = vector.load %arg1[%c0, %c0_0] : memref<128x128xf32, #tpu.memory_space<vmem>>, vector<128x128xf32>
    %c0_1 = arith.constant 0 : index
    %c0_2 = arith.constant 0 : index
    %1 = vector.load %arg2[%c0_1, %c0_2] : memref<128x128xf32, #tpu.memory_space<vmem>>, vector<128x128xf32>
    %cst = arith.constant dense<0.000000e+00> : vector<128x128xf32>
    %2 = tpu.matmul %0, %1, %cst {dimension_numbers = #tpu.dot_dimension_numbers<[1], [0], [0], [1], [0, 0, 1, 1], [], []>} : vector<128x128xf32>, vector<128x128xf32>, vector<128x128xf32> -> vector<128x128xf32>
    %c0_3 = arith.constant 0 : index
    %c0_4 = arith.constant 0 : index
    %3 = vector.load %arg3[%c0_3, %c0_4] : memref<1x128xf32, #tpu.memory_space<vmem>>, vector<1x128xf32>
    %4 = vector.broadcast %3 : vector<1x128xf32> to vector<128x128xf32>
    %5 = arith.addf %2, %4 : vector<128x128xf32>
    %c0_5 = arith.constant 0 : index
    %c0_6 = arith.constant 0 : index
    %6 = vector.load %arg4[%c0_5, %c0_6] : memref<128x128xf32, #tpu.memory_space<vmem>>, vector<128x128xf32>
    tpu.vector_store %arg4[%c0_5, %c0_6], %5 {strides = array<i32>} : memref<128x128xf32, #tpu.memory_space<vmem>>, vector<128x128xf32>,
    return
  }
  func.func @transform_0(%arg0: i32) -> (i32, i32) {
    %c0_i32 = arith.constant 0 : i32
    %c0_i32_0 = arith.constant 0 : i32
    return %arg0, %c0_i32 : i32, i32
  }
  func.func @transform_1(%arg0: i32) -> (i32, i32) {
    %c0_i32 = arith.constant 0 : i32
    %c0_i32_0 = arith.constant 0 : i32
    %c0_i32_1 = arith.constant 0 : i32
    return %c0_i32, %c0_i32_0 : i32, i32
  }
  func.func @transform_2(%arg0: i32) -> (i32, i32) {
    %c0_i32 = arith.constant 0 : i32
    %c0_i32_0 = arith.constant 0 : i32
    %c0_i32_1 = arith.constant 0 : i32
    return %c0_i32, %c0_i32_0 : i32, i32
  }
  func.func @transform_3(%arg0: i32) -> (i32, i32) {
    %c0_i32 = arith.constant 0 : i32
    %c0_i32_0 = arith.constant 0 : i32
    return %arg0, %c0_i32 : i32, i32
  }
}

module attributes {stable_mosaic.version = 11 : i64} {
  func.func @_appnp_resident_kernel(%arg0: i32, %arg1: i32, %arg2: memref<128x128xbf16, #tpu.memory_space<any>>, %arg3: memref<128x128xf32, #tpu.memory_space<vmem>>, %arg4: memref<128x128xf32, #tpu.memory_space<vmem>>, %arg5: memref<128x128xbf16, #tpu.memory_space<vmem>>, %arg6: memref<2x128x128xbf16, #tpu.memory_space<vmem>>, %arg7: memref<!tpu.dma_semaphore, #tpu.memory_space<semaphore_mem>>) attributes {dimension_semantics = [#tpu.dimension_semantics<arbitrary>, #tpu.dimension_semantics<arbitrary>], iteration_bounds = array<i64: 10, 1>, scalar_prefetch = 0 : i64, scratch_operands = 3 : i64, tpu.core_type = #tpu.core_type<tc>, window_params = [{}, {pipeline_mode = #tpu.pipeline_mode<synchronous>, transform_indices = @transform_1, window_bounds = array<i64: 128, 128>}, {pipeline_mode = #tpu.pipeline_mode<synchronous>, transform_indices = @transform_2, window_bounds = array<i64: 128, 128>}]} {
    %c0_i32 = arith.constant 0 : i32
    %0 = arith.cmpi eq, %arg0, %c0_i32 : i32
    %c0_i32_0 = arith.constant 0 : i32
    %1 = arith.cmpi eq, %arg1, %c0_i32_0 : i32
    %2 = arith.andi %0, %1 : i1
    %3 = arith.extui %2 : i1 to i32
    %c0_i32_1 = arith.constant 0 : i32
    %4 = arith.cmpi ne, %3, %c0_i32_1 : i32
    scf.if %4 {
      tpu.enqueue_dma source(%arg2 : memref<128x128xbf16, #tpu.memory_space<any>>) target(%arg5 : memref<128x128xbf16, #tpu.memory_space<vmem>>) target_semaphore(%arg7 : memref<!tpu.dma_semaphore, #tpu.memory_space<semaphore_mem>>)
      tpu.wait_dma2 semaphore(%arg7 : memref<!tpu.dma_semaphore, #tpu.memory_space<semaphore_mem>>) src(%arg2 : memref<128x128xbf16, #tpu.memory_space<any>>) dst(%arg5 : memref<128x128xbf16, #tpu.memory_space<vmem>>)
      %c0_9 = arith.constant 0 : index
      %c0_10 = arith.constant 0 : index
      %29 = vector.load %arg3[%c0_9, %c0_10] : memref<128x128xf32, #tpu.memory_space<vmem>>, vector<128x128xf32>
      %30 = arith.truncf %29 : vector<128x128xf32> to vector<128x128xbf16>
      %c0_11 = arith.constant 0 : index
      %c0_12 = arith.constant 0 : index
      %c0_13 = arith.constant 0 : index
      %31 = vector.load %arg6[%c0_11, %c0_12, %c0_13] : memref<2x128x128xbf16, #tpu.memory_space<vmem>>, vector<1x128x128xbf16>
      %32 = vector.shape_cast %31 : vector<1x128x128xbf16> to vector<128x128xbf16>
      %33 = vector.shape_cast %30 : vector<128x128xbf16> to vector<1x128x128xbf16>
      tpu.vector_store %arg6[%c0_11, %c0_12, %c0_13], %33 {strides = array<i32>} : memref<2x128x128xbf16, #tpu.memory_space<vmem>>, vector<1x128x128xbf16>,
    } else {
    }
    %c1_i32 = arith.constant 1 : i32
    %5 = arith.andi %arg0, %c1_i32 : i32
    %c128_i32 = arith.constant 128 : i32
    %6 = arith.muli %arg1, %c128_i32 : i32
    %7 = tpu.assume_multiple %6, 128 : i32
    %8 = arith.index_cast %7 : i32 to index
    %c0 = arith.constant 0 : index
    %9 = vector.load %arg5[%8, %c0] : memref<128x128xbf16, #tpu.memory_space<vmem>>, vector<128x128xbf16>
    %10 = arith.index_cast %5 : i32 to index
    %c0_2 = arith.constant 0 : index
    %c0_3 = arith.constant 0 : index
    %11 = vector.load %arg6[%10, %c0_2, %c0_3] : memref<2x128x128xbf16, #tpu.memory_space<vmem>>, vector<1x128x128xbf16>
    %12 = vector.shape_cast %11 : vector<1x128x128xbf16> to vector<128x128xbf16>
    %cst = arith.constant dense<0.000000e+00> : vector<128x128xf32>
    %13 = tpu.matmul %9, %12, %cst {dimension_numbers = #tpu.dot_dimension_numbers<[1], [0], [0], [1], [0, 0, 1, 1], [], []>} : vector<128x128xbf16>, vector<128x128xbf16>, vector<128x128xf32> -> vector<128x128xf32>
    %14 = arith.index_cast %7 : i32 to index
    %c0_4 = arith.constant 0 : index
    %15 = vector.load %arg3[%14, %c0_4] : memref<128x128xf32, #tpu.memory_space<vmem>>, vector<128x128xf32>
    %cst_5 = arith.constant 1.000000e-01 : f32
    %16 = vector.broadcast %cst_5 : f32 to vector<128x128xf32>
    %17 = arith.mulf %16, %15 : vector<128x128xf32>
    %18 = arith.addf %13, %17 : vector<128x128xf32>
    %19 = arith.truncf %18 : vector<128x128xf32> to vector<128x128xbf16>
    %c1_i32_6 = arith.constant 1 : i32
    %20 = arith.subi %c1_i32_6, %5 : i32
    %21 = arith.index_cast %20 : i32 to index
    %22 = arith.index_cast %7 : i32 to index
    %c0_7 = arith.constant 0 : index
    %23 = vector.load %arg6[%21, %22, %c0_7] : memref<2x128x128xbf16, #tpu.memory_space<vmem>>, vector<1x128x128xbf16>
    %24 = vector.shape_cast %23 : vector<1x128x128xbf16> to vector<128x128xbf16>
    %25 = vector.shape_cast %19 : vector<128x128xbf16> to vector<1x128x128xbf16>
    tpu.vector_store %arg6[%21, %22, %c0_7], %25 {strides = array<i32>} : memref<2x128x128xbf16, #tpu.memory_space<vmem>>, vector<1x128x128xbf16>,
    %c9_i32 = arith.constant 9 : i32
    %26 = arith.cmpi eq, %arg0, %c9_i32 : i32
    %27 = arith.extui %26 : i1 to i32
    %c0_i32_8 = arith.constant 0 : i32
    %28 = arith.cmpi ne, %27, %c0_i32_8 : i32
    scf.if %28 {
      %29 = arith.index_cast %7 : i32 to index
      %c0_9 = arith.constant 0 : index
      %30 = vector.load %arg4[%29, %c0_9] : memref<128x128xf32, #tpu.memory_space<vmem>>, vector<128x128xf32>
      tpu.vector_store %arg4[%29, %c0_9], %18 {strides = array<i32>} : memref<128x128xf32, #tpu.memory_space<vmem>>, vector<128x128xf32>,
    } else {
    }
    return
  }
  func.func @transform_1(%arg0: i32, %arg1: i32) -> (i32, i32) {
    %c0_i32 = arith.constant 0 : i32
    %c0_i32_0 = arith.constant 0 : i32
    %c0_i32_1 = arith.constant 0 : i32
    return %c0_i32, %c0_i32_0 : i32, i32
  }
  func.func @transform_2(%arg0: i32, %arg1: i32) -> (i32, i32) {
    %c0_i32 = arith.constant 0 : i32
    %c0_i32_0 = arith.constant 0 : i32
    %c0_i32_1 = arith.constant 0 : i32
    return %c0_i32, %c0_i32_0 : i32, i32
  }
}

module attributes {stable_mosaic.version = 11 : i64} {
  func.func @_appnp_resident_kernel(%arg0: i32, %arg1: i32, %arg2: memref<128x128xbf16, #tpu.memory_space<any>>, %arg3: memref<128x128xf32, #tpu.memory_space<vmem>>, %arg4: memref<128x128xf32, #tpu.memory_space<vmem>>, %arg5: memref<128x128xbf16, #tpu.memory_space<vmem>>, %arg6: memref<2x128x128xbf16, #tpu.memory_space<vmem>>, %arg7: memref<!tpu.dma_semaphore, #tpu.memory_space<semaphore_mem>>) attributes {dimension_semantics = [#tpu.dimension_semantics<arbitrary>, #tpu.dimension_semantics<arbitrary>], iteration_bounds = array<i64: 10, 1>, scalar_prefetch = 0 : i64, scratch_operands = 3 : i64, tpu.core_type = #tpu.core_type<tc>, window_params = [{}, {pipeline_mode = #tpu.pipeline_mode<synchronous>, transform_indices = @transform_1, window_bounds = array<i64: 128, 128>}, {pipeline_mode = #tpu.pipeline_mode<synchronous>, transform_indices = @transform_2, window_bounds = array<i64: 128, 128>}]} {
    %c0_i32 = arith.constant 0 : i32
    %0 = arith.cmpi eq, %arg0, %c0_i32 : i32
    %c0_i32_0 = arith.constant 0 : i32
    %1 = arith.cmpi eq, %arg1, %c0_i32_0 : i32
    %2 = arith.andi %0, %1 : i1
    %3 = arith.extui %2 : i1 to i32
    %c0_i32_1 = arith.constant 0 : i32
    %4 = arith.cmpi ne, %3, %c0_i32_1 : i32
    scf.if %4 {
      tpu.enqueue_dma source(%arg2 : memref<128x128xbf16, #tpu.memory_space<any>>) target(%arg5 : memref<128x128xbf16, #tpu.memory_space<vmem>>) target_semaphore(%arg7 : memref<!tpu.dma_semaphore, #tpu.memory_space<semaphore_mem>>)
      tpu.wait_dma2 semaphore(%arg7 : memref<!tpu.dma_semaphore, #tpu.memory_space<semaphore_mem>>) src(%arg2 : memref<128x128xbf16, #tpu.memory_space<any>>) dst(%arg5 : memref<128x128xbf16, #tpu.memory_space<vmem>>)
      %c0_9 = arith.constant 0 : index
      %c0_10 = arith.constant 0 : index
      %29 = vector.load %arg3[%c0_9, %c0_10] : memref<128x128xf32, #tpu.memory_space<vmem>>, vector<128x128xf32>
      %30 = arith.truncf %29 : vector<128x128xf32> to vector<128x128xbf16>
      %c0_11 = arith.constant 0 : index
      %c0_12 = arith.constant 0 : index
      %c0_13 = arith.constant 0 : index
      %31 = vector.load %arg6[%c0_11, %c0_12, %c0_13] : memref<2x128x128xbf16, #tpu.memory_space<vmem>>, vector<1x128x128xbf16>
      %32 = vector.shape_cast %31 : vector<1x128x128xbf16> to vector<128x128xbf16>
      %33 = vector.shape_cast %30 : vector<128x128xbf16> to vector<1x128x128xbf16>
      tpu.vector_store %arg6[%c0_11, %c0_12, %c0_13], %33 {strides = array<i32>} : memref<2x128x128xbf16, #tpu.memory_space<vmem>>, vector<1x128x128xbf16>,
    } else {
    }
    %c1_i32 = arith.constant 1 : i32
    %5 = arith.andi %arg0, %c1_i32 : i32
    %c128_i32 = arith.constant 128 : i32
    %6 = arith.muli %arg1, %c128_i32 : i32
    %7 = tpu.assume_multiple %6, 128 : i32
    %8 = arith.index_cast %7 : i32 to index
    %c0 = arith.constant 0 : index
    %9 = vector.load %arg5[%8, %c0] : memref<128x128xbf16, #tpu.memory_space<vmem>>, vector<128x128xbf16>
    %10 = arith.index_cast %5 : i32 to index
    %c0_2 = arith.constant 0 : index
    %c0_3 = arith.constant 0 : index
    %11 = vector.load %arg6[%10, %c0_2, %c0_3] : memref<2x128x128xbf16, #tpu.memory_space<vmem>>, vector<1x128x128xbf16>
    %12 = vector.shape_cast %11 : vector<1x128x128xbf16> to vector<128x128xbf16>
    %cst = arith.constant dense<0.000000e+00> : vector<128x128xf32>
    %13 = tpu.matmul %9, %12, %cst {dimension_numbers = #tpu.dot_dimension_numbers<[1], [0], [0], [1], [0, 0, 1, 1], [], []>} : vector<128x128xbf16>, vector<128x128xbf16>, vector<128x128xf32> -> vector<128x128xf32>
    %14 = arith.index_cast %7 : i32 to index
    %c0_4 = arith.constant 0 : index
    %15 = vector.load %arg3[%14, %c0_4] : memref<128x128xf32, #tpu.memory_space<vmem>>, vector<128x128xf32>
    %cst_5 = arith.constant 1.000000e-01 : f32
    %16 = vector.broadcast %cst_5 : f32 to vector<128x128xf32>
    %17 = arith.mulf %16, %15 : vector<128x128xf32>
    %18 = arith.addf %13, %17 : vector<128x128xf32>
    %19 = arith.truncf %18 : vector<128x128xf32> to vector<128x128xbf16>
    %c1_i32_6 = arith.constant 1 : i32
    %20 = arith.subi %c1_i32_6, %5 : i32
    %21 = arith.index_cast %20 : i32 to index
    %22 = arith.index_cast %7 : i32 to index
    %c0_7 = arith.constant 0 : index
    %23 = vector.load %arg6[%21, %22, %c0_7] : memref<2x128x128xbf16, #tpu.memory_space<vmem>>, vector<1x128x128xbf16>
    %24 = vector.shape_cast %23 : vector<1x128x128xbf16> to vector<128x128xbf16>
    %25 = vector.shape_cast %19 : vector<128x128xbf16> to vector<1x128x128xbf16>
    tpu.vector_store %arg6[%21, %22, %c0_7], %25 {strides = array<i32>} : memref<2x128x128xbf16, #tpu.memory_space<vmem>>, vector<1x128x128xbf16>,
    %c9_i32 = arith.constant 9 : i32
    %26 = arith.cmpi eq, %arg0, %c9_i32 : i32
    %27 = arith.extui %26 : i1 to i32
    %c0_i32_8 = arith.constant 0 : i32
    %28 = arith.cmpi ne, %27, %c0_i32_8 : i32
    scf.if %28 {
      %cst_9 = arith.constant 0.000000e+00 : f32
      %29 = vector.broadcast %cst_9 : f32 to vector<128x128xf32>
      %30 = arith.maximumf %18, %29 : vector<128x128xf32>
      %31 = arith.index_cast %7 : i32 to index
      %c0_10 = arith.constant 0 : index
      %32 = vector.load %arg4[%31, %c0_10] : memref<128x128xf32, #tpu.memory_space<vmem>>, vector<128x128xf32>
      tpu.vector_store %arg4[%31, %c0_10], %30 {strides = array<i32>} : memref<128x128xf32, #tpu.memory_space<vmem>>, vector<128x128xf32>,
    } else {
    }
    return
  }
  func.func @transform_1(%arg0: i32, %arg1: i32) -> (i32, i32) {
    %c0_i32 = arith.constant 0 : i32
    %c0_i32_0 = arith.constant 0 : i32
    %c0_i32_1 = arith.constant 0 : i32
    return %c0_i32, %c0_i32_0 : i32, i32
  }
  func.func @transform_2(%arg0: i32, %arg1: i32) -> (i32, i32) {
    %c0_i32 = arith.constant 0 : i32
    %c0_i32_0 = arith.constant 0 : i32
    %c0_i32_1 = arith.constant 0 : i32
    return %c0_i32, %c0_i32_0 : i32, i32
  }
}

</mosaic_0001>

<llo_original>
// kernel: appnp_benx_forward.5
$region0: #{appnp_benx_forward.5}
  #allocation0 [shape = 'u32[]', space=smem, size = 0x4, offset = 0x4, fixed_abs, tag = 'smem constant byte address 0x4 - core index']
  #allocation1 [shape = 'u32[144,128]{1,0:T(1,128)}', space=vmem, size = 0x12000, scoped, tag = 'internal scratch']
  %s0 = inlined_call_operand.vmem [shape: f32[128,128], index: 0, kind: input, shape index: {}]
  %s1 = inlined_call_operand.vmem [shape: f32[128,128], index: 1, kind: input, shape index: {}]
  %s2 = inlined_call_operand.vmem [shape: f32[1,128], index: 2, kind: input, shape index: {}]
  %s3 = inlined_call_operand.vmem [shape: f32[128,128], index: 3, kind: output, shape index: {}]
  %s4 = sld [smem:[#allocation0]]
  $region22: #{appnp_benx_forward.5} parent=0
    _
  %s6 = ssub.s32 1, %s4
  %s7 = scalar_select 0, %s6, %s4
  // Predicated region
  $region2: #{appnp_benx_forward.5} parent=0 // pred_check
    _
  $region3: #{appnp_benx_forward.5} parent=0 // pred_check_branch
    %9 = sbr.rel (0) target = $region5
  $region4: #{appnp_benx_forward.5} parent=0 // pred_region
    _
  $region5: #{appnp_benx_forward.5} parent=0 // pred_fallthru
    _
  // Predicated region
  $region6: #{appnp_benx_forward.5} parent=0 // pred_check
    _
  $region7: #{appnp_benx_forward.5} parent=0 // pred_check_branch
    %11 = sbr.rel (0) target = $region9
  $region8: #{appnp_benx_forward.5} parent=0 // pred_region
    _
  $region9: #{appnp_benx_forward.5} parent=0 // pred_fallthru
    _
  // Predicated region
  $region10: #{appnp_benx_forward.5} parent=0 // pred_check
    _
  $region11: #{appnp_benx_forward.5} parent=0 // pred_check_branch
    %13 = sbr.rel (0) target = $region13
  $region12: #{appnp_benx_forward.5} parent=0 // pred_region
    _
  $region13: #{appnp_benx_forward.5} parent=0 // pred_fallthru
    _
  %v14 = vld [vmem:[%s0] sm:$0xff]
  %v15 = vld [vmem:[%s0 + $0x8] sm:$0xff]
  %v16 = vld [vmem:[%s0 + $0x10] sm:$0xff]
  %v17 = vld [vmem:[%s0 + $0x18] sm:$0xff]
  %v18 = vld [vmem:[%s0 + $0x20] sm:$0xff]
  %v19 = vld [vmem:[%s0 + $0x28] sm:$0xff]
  %v20 = vld [vmem:[%s0 + $0x30] sm:$0xff]
  %v21 = vld [vmem:[%s0 + $0x38] sm:$0xff]
  %v22 = vld [vmem:[%s0 + $0x40] sm:$0xff]
  %v23 = vld [vmem:[%s0 + $0x48] sm:$0xff]
  %v24 = vld [vmem:[%s0 + $0x50] sm:$0xff]
  %v25 = vld [vmem:[%s0 + $0x58] sm:$0xff]
  %v26 = vld [vmem:[%s0 + $0x60] sm:$0xff]
  %v27 = vld [vmem:[%s0 + $0x68] sm:$0xff]
  %v28 = vld [vmem:[%s0 + $0x70] sm:$0xff]
  %v29 = vld [vmem:[%s0 + $0x78] sm:$0xff]
  %v30 = vld [vmem:[%s1] sm:$0xff]
  %v31 = vld [vmem:[%s1 + $0x8] sm:$0xff]
  %v32 = vld [vmem:[%s1 + $0x10] sm:$0xff]
  %v33 = vld [vmem:[%s1 + $0x18] sm:$0xff]
  %v34 = vld [vmem:[%s1 + $0x20] sm:$0xff]
  %v35 = vld [vmem:[%s1 + $0x28] sm:$0xff]
  %v36 = vld [vmem:[%s1 + $0x30] sm:$0xff]
  %v37 = vld [vmem:[%s1 + $0x38] sm:$0xff]
  %v38 = vld [vmem:[%s1 + $0x40] sm:$0xff]
  %v39 = vld [vmem:[%s1 + $0x48] sm:$0xff]
  %v40 = vld [vmem:[%s1 + $0x50] sm:$0xff]
  %v41 = vld [vmem:[%s1 + $0x58] sm:$0xff]
  %v42 = vld [vmem:[%s1 + $0x60] sm:$0xff]
  %v43 = vld [vmem:[%s1 + $0x68] sm:$0xff]
  %v44 = vld [vmem:[%s1 + $0x70] sm:$0xff]
  %v45 = vld [vmem:[%s1 + $0x78] sm:$0xff]
  %v46 = vld [vmem:[%s2] sm:$0x1]
  %v48 = vlaneseq
  %v49 = vshrl.u32 %v48, 7
  %v50 = vsub.s32 0, %v49
  %v51 = vrot.slane %v46, %v50
  %53 = vmatprep.subr.mxu0 0.0
  %54 = vmatpush1.msra.mxu0 %v30
  %55 = vmatprep.subr.mxu0 0.0
  %56 = vmatpush1.msra.mxu0 %v31
  %57 = vmatprep.subr.mxu0 0.0
  %58 = vmatpush1.msra.mxu0 %v32
  %59 = vmatprep.subr.mxu0 0.0
  %60 = vmatpush1.msra.mxu0 %v33
  %61 = vmatprep.subr.mxu0 0.0
  %62 = vmatpush1.msra.mxu0 %v34
  %63 = vmatprep.subr.mxu0 0.0
  %64 = vmatpush1.msra.mxu0 %v35
  %65 = vmatprep.subr.mxu0 0.0
  %66 = vmatpush1.msra.mxu0 %v36
  %67 = vmatprep.subr.mxu0 0.0
  %68 = vmatpush1.msra.mxu0 %v37
  %69 = vmatprep.subr.mxu0 0.0
  %70 = vmatpush1.msra.mxu0 %v38
  %71 = vmatprep.subr.mxu0 0.0
  %72 = vmatpush1.msra.mxu0 %v39
  %73 = vmatprep.subr.mxu0 0.0
  %74 = vmatpush1.msra.mxu0 %v40
  %75 = vmatprep.subr.mxu0 0.0
  %76 = vmatpush1.msra.mxu0 %v41
  %77 = vmatprep.subr.mxu0 0.0
  %78 = vmatpush1.msra.mxu0 %v42
  %79 = vmatprep.subr.mxu0 0.0
  %80 = vmatpush1.msra.mxu0 %v43
  %81 = vmatprep.subr.mxu0 0.0
  %82 = vmatpush1.msra.mxu0 %v44
  %83 = vmatprep.subr.mxu0 0.0
  %84 = vmatpush1.msra.mxu0 %v45
  %85 = vmatprep.subr.mxu0 0.0
  %86 = vmatpush1.msra.mxu0 0.0
  %87 = vmatprep.subr.mxu0 0.0
  %88 = vmatpush1.msra.mxu0 0.0
  %89 = vmatprep.subr.mxu0 0.0
  %90 = vmatpush1.msra.mxu0 0.0
  %91 = vmatprep.subr.mxu0 0.0
  %92 = vmatpush1.msra.mxu0 0.0
  %93 = vmatprep.subr.mxu0 0.0
  %94 = vmatpush1.msra.mxu0 0.0
  %95 = vmatprep.subr.mxu0 0.0
  %96 = vmatpush1.msra.mxu0 0.0
  %97 = vmatprep.subr.mxu0 0.0
  %98 = vmatpush1.msra.mxu0 0.0
  %99 = vmatprep.subr.mxu0 0.0
  %100 = vmatpush1.msra.mxu0 0.0
  %101 = vmatprep.subr.mxu0 0.0
  %102 = vmatpush1.msra.mxu0 0.0
  %103 = vmatprep.subr.mxu0 0.0
  %104 = vmatpush1.msra.mxu0 0.0
  %105 = vmatprep.subr.mxu0 0.0
  %106 = vmatpush1.msra.mxu0 0.0
  %107 = vmatprep.subr.mxu0 0.0
  %108 = vmatpush1.msra.mxu0 0.0
  %109 = vmatprep.subr.mxu0 0.0
  %110 = vmatpush1.msra.mxu0 0.0
  %111 = vmatprep.subr.mxu0 0.0
  %112 = vmatpush1.msra.mxu0 0.0
  %113 = vmatprep.subr.mxu0 0.0
  %114 = vmatpush1.msra.mxu0 0.0
  %115 = vmatprep.subr.mxu0 0.0
  %116 = vmatpush1.msra.mxu0 0.0
  %117 = vmatprep.mubr.f32.mxu0 0.0
  %118 = vmatmul.mubr.f32.gmra.mrb[0].mxu0 %v14
  %v119 = vpop.f32.mrb[0].mxu0
  %v120 = vadd.f32 %v51, %v119
  %v121 = vpop.f32.mrb[0].mxu0
  %122 = vmatprep.mubr.f32.mxu0 0.0
  %123 = vmatmul.mubr.f32.gmra.mrb[0].mxu0 %v15
  %v124 = vpop.f32.mrb[0].mxu0
  %v125 = vadd.f32 %v51, %v124
  %v126 = vpop.f32.mrb[0].mxu0
  %127 = vmatprep.mubr.f32.mxu0 0.0
  %128 = vmatmul.mubr.f32.gmra.mrb[0].mxu0 %v16
  %v129 = vpop.f32.mrb[0].mxu0
  %v130 = vadd.f32 %v51, %v129
  %v131 = vpop.f32.mrb[0].mxu0
  %132 = vmatprep.mubr.f32.mxu0 0.0
  %133 = vmatmul.mubr.f32.gmra.mrb[0].mxu0 %v17
  %v134 = vpop.f32.mrb[0].mxu0
  %v135 = vadd.f32 %v51, %v134
  %v136 = vpop.f32.mrb[0].mxu0
  %137 = vmatprep.mubr.f32.mxu0 0.0
  %138 = vmatmul.mubr.f32.gmra.mrb[0].mxu0 %v18
  %v139 = vpop.f32.mrb[0].mxu0
  %v140 = vadd.f32 %v51, %v139
  %v141 = vpop.f32.mrb[0].mxu0
  %142 = vmatprep.mubr.f32.mxu0 0.0
  %143 = vmatmul.mubr.f32.gmra.mrb[0].mxu0 %v19
  %v144 = vpop.f32.mrb[0].mxu0
  %v145 = vadd.f32 %v51, %v144
  %v146 = vpop.f32.mrb[0].mxu0
  %147 = vmatprep.mubr.f32.mxu0 0.0
  %148 = vmatmul.mubr.f32.gmra.mrb[0].mxu0 %v20
  %v149 = vpop.f32.mrb[0].mxu0
  %v150 = vadd.f32 %v51, %v149
  %v151 = vpop.f32.mrb[0].mxu0
  %152 = vmatprep.mubr.f32.mxu0 0.0
  %153 = vmatmul.mubr.f32.gmra.mrb[0].mxu0 %v21
  %v154 = vpop.f32.mrb[0].mxu0
  %v155 = vadd.f32 %v51, %v154
  %v156 = vpop.f32.mrb[0].mxu0
  %157 = vmatprep.mubr.f32.mxu0 0.0
  %158 = vmatmul.mubr.f32.gmra.mrb[0].mxu0 %v22
  %v159 = vpop.f32.mrb[0].mxu0
  %v160 = vadd.f32 %v51, %v159
  %v161 = vpop.f32.mrb[0].mxu0
  %162 = vmatprep.mubr.f32.mxu0 0.0
  %163 = vmatmul.mubr.f32.gmra.mrb[0].mxu0 %v23
  %v164 = vpop.f32.mrb[0].mxu0
  %v165 = vadd.f32 %v51, %v164
  %v166 = vpop.f32.mrb[0].mxu0
  %167 = vmatprep.mubr.f32.mxu0 0.0
  %168 = vmatmul.mubr.f32.gmra.mrb[0].mxu0 %v24
  %v169 = vpop.f32.mrb[0].mxu0
  %v170 = vadd.f32 %v51, %v169
  %v171 = vpop.f32.mrb[0].mxu0
  %172 = vmatprep.mubr.f32.mxu0 0.0
  %173 = vmatmul.mubr.f32.gmra.mrb[0].mxu0 %v25
  %v174 = vpop.f32.mrb[0].mxu0
  %v175 = vadd.f32 %v51, %v174
  %v176 = vpop.f32.mrb[0].mxu0
  %177 = vmatprep.mubr.f32.mxu0 0.0
  %178 = vmatmul.mubr.f32.gmra.mrb[0].mxu0 %v26
  %v179 = vpop.f32.mrb[0].mxu0
  %v180 = vadd.f32 %v51, %v179
  %v181 = vpop.f32.mrb[0].mxu0
  %182 = vmatprep.mubr.f32.mxu0 0.0
  %183 = vmatmul.mubr.f32.gmra.mrb[0].mxu0 %v27
  %v184 = vpop.f32.mrb[0].mxu0
  %v185 = vadd.f32 %v51, %v184
  %v186 = vpop.f32.mrb[0].mxu0
  %187 = vmatprep.mubr.f32.mxu0 0.0
  %188 = vmatmul.mubr.f32.gmra.mrb[0].mxu0 %v28
  %v189 = vpop.f32.mrb[0].mxu0
  %v190 = vadd.f32 %v51, %v189
  %v191 = vpop.f32.mrb[0].mxu0
  %192 = vmatprep.mubr.f32.mxu0 0.0
  %193 = vmatmul.mubr.f32.gmra.mrb[0].mxu0 %v29
  %v194 = vpop.f32.mrb[0].mxu0
  %v195 = vadd.f32 %v51, %v194
  %v196 = vpop.f32.mrb[0].mxu0
  %197 = vdwg.mxu0
  %198 = vst [vmem:[%s3] sm:$0xff] %v120
  %199 = vst [vmem:[%s3 + $0x8] sm:$0xff] %v125
  %200 = vst [vmem:[%s3 + $0x10] sm:$0xff] %v130
  %201 = vst [vmem:[%s3 + $0x18] sm:$0xff] %v135
  %202 = vst [vmem:[%s3 + $0x20] sm:$0xff] %v140
  %203 = vst [vmem:[%s3 + $0x28] sm:$0xff] %v145
  %204 = vst [vmem:[%s3 + $0x30] sm:$0xff] %v150
  %205 = vst [vmem:[%s3 + $0x38] sm:$0xff] %v155
  %206 = vst [vmem:[%s3 + $0x40] sm:$0xff] %v160
  %207 = vst [vmem:[%s3 + $0x48] sm:$0xff] %v165
  %208 = vst [vmem:[%s3 + $0x50] sm:$0xff] %v170
  %209 = vst [vmem:[%s3 + $0x58] sm:$0xff] %v175
  %210 = vst [vmem:[%s3 + $0x60] sm:$0xff] %v180
  %211 = vst [vmem:[%s3 + $0x68] sm:$0xff] %v185
  %212 = vst [vmem:[%s3 + $0x70] sm:$0xff] %v190
  %213 = vst [vmem:[%s3 + $0x78] sm:$0xff] %v195
  // Predicated region
  $region14: #{appnp_benx_forward.5} parent=0 // pred_check
    _
  $region15: #{appnp_benx_forward.5} parent=0 // pred_check_branch
    %215 = sbr.rel (0) target = $region17
  $region16: #{appnp_benx_forward.5} parent=0 // pred_region
    _
  $region17: #{appnp_benx_forward.5} parent=0 // pred_fallthru
    _
  // Predicated region
  $region18: #{appnp_benx_forward.5} parent=0 // pred_check
    _
  $region19: #{appnp_benx_forward.5} parent=0 // pred_check_branch
    %217 = sbr.rel (0) target = $region21
  $region20: #{appnp_benx_forward.5} parent=0 // pred_region
    _
  $region21: #{appnp_benx_forward.5} parent=0 // pred_fallthru
    _

// kernel: appnp_benx_forward.9
$region0: #{appnp_benx_forward.9}
  #allocation0 [shape = 'u32[]', space=smem, size = 0x4, offset = 0x4, fixed_abs, tag = 'smem constant byte address 0x4 - core index']
  #allocation1 [shape = 'u32[144,128]{1,0:T(1,128)}', space=vmem, size = 0x12000, scoped, tag = 'internal scratch']
  #allocation2 [shape = 'bf16[128,128]{1,0:T(16,128)(2,1)}', space=vmem, size = 0x8000, scoped, tag = 'scratch operand']
  #allocation3 [shape = 'bf16[2,128,128]{2,1,0:T(16,128)(2,1)}', space=vmem, size = 0x10000, scoped, tag = 'scratch operand']
  #allocation4 [shape = 's32[1]{0}', space=sflag, size = 0x4, scoped, tag = 'scratch operand']
  #allocation5 [shape = 's32[]', space=sflag, size = 0x4, offset = 0, fixed_abs, tag = 'sflag constant byte address 0x0 - dummy sync flag']
  %s0 = inlined_call_operand.vmem [shape: bf16[128,128], index: 0, kind: input, shape index: {}]
  %s1 = inlined_call_operand.vmem [shape: f32[128,128], index: 1, kind: input, shape index: {}]
  %s2 = inlined_call_operand.vmem [shape: f32[128,128], index: 2, kind: output, shape index: {}]
  %s3 = sld [smem:[#allocation0]]
  $region79: #{appnp_benx_forward.9} parent=0
    _
  %s5 = ssub.s32 1, %s3
  %s6 = scalar_select 0, %s5, %s3
  loop: start=0, step=1, limit=12
  $region2: #{appnp_benx_forward.9} parent=0 // loop_pre_header
    _
  $region3: #{appnp_benx_forward.9} parent=0 // loop_header
    %s8 = sphi 0, %s12
    %p9 = scmp.ge.s32.totalorder %s8, 12
    %s15 = sphi 0, %s27
    %s16 = sphi 0, %s23
    %s17 = sphi 0, %s15
    %s18 = sphi 0, %s16
    %s19 = sphi 0, %s17
    %s20 = sphi 0, %s18
    %s28 = sphi 0, %s28
    %s30 = sphi 0, %s28
    %s31 = sphi 0, %s30
    %s45 = sphi 0, %s31
    %s49 = sphi 0, %s49
    %s51 = sphi 0, %s49
    %s52 = sphi 0, %s51
    %s66 = sphi 0, %s52
  $region4: #{appnp_benx_forward.9} parent=0 // loop_header_branch
    %11 = sbr.rel (%p9) target = $region8
  $region5: #{appnp_benx_forward.9} parent=0 // loop_body
    %s13 = ssub.s32 %s8, 1
    %s14 = ssub.s32 %s8, 2
    %s21 = sadd.s32 1, %s16
    %p22 = scmp.ge.s32.totalorder %s21, 1
    %s23 = scalar_select %p22, 0, %s21
    %s24 = sadd.s32 1, %s15
    %s25 = scalar_select %p22, %s24, %s15
    %p26 = scmp.ge.s32.totalorder %s25, 10
    %s27 = scalar_select %p26, 0, %s25
    %s29 = sadd.s32 %s28, 1
    %p32 = scmp.eq.s32.totalorder %s8, 9
    %p33 = scmp.ne.s32.totalorder %s28, %s30
    %p34 = scmp.eq.s32.totalorder %s8, 0
    %p35 = por %p33, %p34
    %p36 = scmp.ne.s32.totalorder %s28, %s30
    %p37 = scmp.eq.s32.totalorder %s13, 9
    %p38 = por %p36, %p37
    %p39 = scmp.ne.s32.totalorder %s30, %s31
    %p40 = scmp.eq.s32.totalorder %s13, 0
    %p41 = por %p39, %p40
    %p42 = scmp.ne.s32.totalorder %s30, %s31
    %p43 = scmp.eq.s32.totalorder %s14, 9
    %p44 = por %p42, %p43
    %p46 = scmp.ne.s32.totalorder %s31, %s45
    %p47 = scmp.eq.s32.totalorder %s14, 0
    %p48 = por %p46, %p47
    %s50 = sadd.s32 %s49, 1
    %p53 = scmp.eq.s32.totalorder %s8, 9
    %p54 = scmp.ne.s32.totalorder %s49, %s51
    %p55 = scmp.eq.s32.totalorder %s8, 0
    %p56 = por %p54, %p55
    %p57 = scmp.ne.s32.totalorder %s49, %s51
    %p58 = scmp.eq.s32.totalorder %s13, 9
    %p59 = por %p57, %p58
    %p60 = scmp.ne.s32.totalorder %s51, %s52
    %p61 = scmp.eq.s32.totalorder %s13, 0
    %p62 = por %p60, %p61
    %p63 = scmp.ne.s32.totalorder %s51, %s52
    %p64 = scmp.eq.s32.totalorder %s14, 9
    %p65 = por %p63, %p64
    %p67 = scmp.ne.s32.totalorder %s52, %s66
    %p68 = scmp.eq.s32.totalorder %s14, 0
    %p69 = por %p67, %p68
    %p70 = scmp.le.s32.totalorder 1, %s8
    %p71 = scmp.lt.s32.totalorder %s8, 11
    %p72 = pnand %p70, %p71
    %p73 = pneg %p72
    // Predicated region
    $region9: #{appnp_benx_forward.9} parent=5 // pred_check
      _
    $region10: #{appnp_benx_forward.9} parent=5 // pred_check_branch
      %75 = sbr.rel (%p72) target = $region12
    $region11: #{appnp_benx_forward.9} parent=5 // pred_region
      %s76 = ssub.s32 %s8, 1
      // Predicated region
      $region13: #{appnp_benx_forward.9} parent=11 // pred_check
        %p77 = pneg %p41
      $region14: #{appnp_benx_forward.9} parent=11 // pred_check_branch
        %79 = sbr.rel (%p77) target = $region16
      $region15: #{appnp_benx_forward.9} parent=11 // pred_region
        _
      $region16: #{appnp_benx_forward.9} parent=11 // pred_fallthru
        _
    $region12: #{appnp_benx_forward.9} parent=5 // pred_fallthru
      _
    %p80 = scmp.lt.s32.totalorder %s8, 10
    // Predicated region
    $region17: #{appnp_benx_forward.9} parent=5 // pred_check
      %p81 = pneg %p80
    $region18: #{appnp_benx_forward.9} parent=5 // pred_check_branch
      %83 = sbr.rel (%p81) target = $region20
    $region19: #{appnp_benx_forward.9} parent=5 // pred_region
      _
    $region20: #{appnp_benx_forward.9} parent=5 // pred_fallthru
      _
    %p84 = scmp.le.s32.totalorder 1, %s8
    %p85 = scmp.lt.s32.totalorder %s8, 11
    %p86 = pnand %p84, %p85
    %p87 = pneg %p86
    // Predicated region
    $region21: #{appnp_benx_forward.9} parent=5 // pred_check
      _
    $region22: #{appnp_benx_forward.9} parent=5 // pred_check_branch
      %89 = sbr.rel (%p86) target = $region24
    $region23: #{appnp_benx_forward.9} parent=5 // pred_region
      %s90 = ssub.s32 %s8, 1
      %p91 = pneg %p41
      %p92 = pneg %p38
      %p93 = pneg %p62
      %p94 = pneg %p59
      %p96 = scmp.eq.s32.totalorder %s17, 0
      %p97 = scmp.eq.s32.totalorder %s18, 0
      %p98 = pnand %p96, %p97
      %p99 = pneg %p98
      // Predicated region
      $region25: #{appnp_benx_forward.9} parent=23 // pred_check
        _
      $region26: #{appnp_benx_forward.9} parent=23 // pred_check_branch
        %101 = sbr.rel (%p98) target = $region28
      $region27: #{appnp_benx_forward.9} parent=23 // pred_region
        %p103 = scmp.lt.u32.totalorder 64, 8
        %p104 = pneg %p103
        // Predicated region
        $region29: #{appnp_benx_forward.9} parent=27 // pred_check
          _
        $region30: #{appnp_benx_forward.9} parent=27 // pred_check_branch
          %106 = sbr.rel (%p103) target = $region32
        $region31: #{appnp_benx_forward.9} parent=27 // pred_region
          %s121 = sand.u32 64, 7
          %p122 = scmp.eq.s32.totalorder %s121, 0
          // Predicated region
          $region44: #{appnp_benx_forward.9} parent=31 // pred_check
            %p123 = pneg %p122
          $region45: #{appnp_benx_forward.9} parent=31 // pred_check_branch
            %125 = sbr.rel (%p123) target = $region47
          $region46: #{appnp_benx_forward.9} parent=31 // pred_region
            loop: start=0, step=1, limit=1
            $region48: #{appnp_benx_forward.9} parent=46 // loop_pre_header
              _
            $region49: #{appnp_benx_forward.9} parent=46 // loop_header
              %s127 = sphi 0, %s131
              %p128 = scmp.ge.s32.totalorder %s127, 1
              %s132 = sphi %s0, %s0
              %s133 = sphi [#allocation2], [#allocation2]
            $region50: #{appnp_benx_forward.9} parent=46 // loop_header_branch
              %130 = sbr.rel (%p128) target = $region54
            $region51: #{appnp_benx_forward.9} parent=46 // loop_body
              %v134 = vld [vmem:[%s132] sm:$0xff]
              %135 = vst [vmem:[%s133] sm:$0xff] %v134
              %v136 = vld [vmem:[%s132 + $0x8] sm:$0xff]
              %137 = vst [vmem:[%s133 + $0x8] sm:$0xff] %v136
              %v138 = vld [vmem:[%s132 + $0x10] sm:$0xff]
              %139 = vst [vmem:[%s133 + $0x10] sm:$0xff] %v138
              %v140 = vld [vmem:[%s132 + $0x18] sm:$0xff]
              %141 = vst [vmem:[%s133 + $0x18] sm:$0xff] %v140
              %v142 = vld [vmem:[%s132 + $0x20] sm:$0xff]
              %143 = vst [vmem:[%s133 + $0x20] sm:$0xff] %v142
              %v144 = vld [vmem:[%s132 + $0x28] sm:$0xff]
              %145 = vst [vmem:[%s133 + $0x28] sm:$0xff] %v144
              %v146 = vld [vmem:[%s132 + $0x30] sm:$0xff]
              %147 = vst [vmem:[%s133 + $0x30] sm:$0xff] %v146
              %v148 = vld [vmem:[%s132 + $0x38] sm:$0xff]
              %149 = vst [vmem:[%s133 + $0x38] sm:$0xff] %v148
            $region52: #{appnp_benx_forward.9} parent=46 // loop_footer
              %s131 = sadd.s32 1, %s127
            $region53: #{appnp_benx_forward.9} parent=46 // loop_footer_branch
              %126 = sbr.rel target = $region49
            $region54: #{appnp_benx_forward.9} parent=46 // loop_exit
              _
          $region47: #{appnp_benx_forward.9} parent=31 // pred_fallthru
            _
          %p150 = pneg %p122
          // Predicated region
          $region55: #{appnp_benx_forward.9} parent=31 // pred_check
            _
          $region56: #{appnp_benx_forward.9} parent=31 // pred_check_branch
            %152 = sbr.rel (%p122) target = $region58
          $region57: #{appnp_benx_forward.9} parent=31 // pred_region
            %s153 = sand.u32 64, 7
          $region58: #{appnp_benx_forward.9} parent=31 // pred_fallthru
            _
        $region32: #{appnp_benx_forward.9} parent=27 // pred_fallthru
          _
        // Predicated region
        $region33: #{appnp_benx_forward.9} parent=27 // pred_check
          %p107 = pneg %p103
        $region34: #{appnp_benx_forward.9} parent=27 // pred_check_branch
          %109 = sbr.rel (%p107) target = $region36
        $region35: #{appnp_benx_forward.9} parent=27 // pred_region
          %s110 = sshllo.u32 0, 64
          loop: start=0, step=1, limit=1
          $region37: #{appnp_benx_forward.9} parent=35 // loop_pre_header
            _
          $region38: #{appnp_benx_forward.9} parent=35 // loop_header
            %s112 = sphi 0, %s116
            %p113 = scmp.ge.s32.totalorder %s112, 1
            %s117 = sphi %s0, %s0
            %s118 = sphi [#allocation2], [#allocation2]
          $region39: #{appnp_benx_forward.9} parent=35 // loop_header_branch
            %115 = sbr.rel (%p113) target = $region43
          $region40: #{appnp_benx_forward.9} parent=35 // loop_body
            %v119 = vld [vmem:[%s117] sm:%s110]
            %120 = vst [vmem:[%s118] sm:%s110] %v119
          $region41: #{appnp_benx_forward.9} parent=35 // loop_footer
            %s116 = sadd.s32 1, %s112
          $region42: #{appnp_benx_forward.9} parent=35 // loop_footer_branch
            %111 = sbr.rel target = $region38
          $region43: #{appnp_benx_forward.9} parent=35 // loop_exit
            _
        $region36: #{appnp_benx_forward.9} parent=27 // pred_fallthru
          _
        // Predicated region
        $region59: #{appnp_benx_forward.9} parent=27 // pred_check
          _
        $region60: #{appnp_benx_forward.9} parent=27 // pred_check_branch
          %156 = sbr.rel (0) target = $region62
        $region61: #{appnp_benx_forward.9} parent=27 // pred_region
          %157 = vsyncadd [#allocation4], 1024
        $region62: #{appnp_benx_forward.9} parent=27 // pred_fallthru
          _
        %s158 = smul.u32 4, 16
        %s159 = smul.u32 %s158, 1
        %s160 = sshll.u32 %s159, 4
        %161 = dma.done [#allocation4], %s160
        %v162 = vld [vmem:[%s1] sm:$0xff]
        %v163 = vld [vmem:[%s1 + $0x8] sm:$0xff]
        %v164 = vld [vmem:[%s1 + $0x10] sm:$0xff]
        %v165 = vld [vmem:[%s1 + $0x18] sm:$0xff]
        %v166 = vld [vmem:[%s1 + $0x20] sm:$0xff]
        %v167 = vld [vmem:[%s1 + $0x28] sm:$0xff]
        %v168 = vld [vmem:[%s1 + $0x30] sm:$0xff]
        %v169 = vld [vmem:[%s1 + $0x38] sm:$0xff]
        %v170 = vld [vmem:[%s1 + $0x40] sm:$0xff]
        %v171 = vld [vmem:[%s1 + $0x48] sm:$0xff]
        %v172 = vld [vmem:[%s1 + $0x50] sm:$0xff]
        %v173 = vld [vmem:[%s1 + $0x58] sm:$0xff]
        %v174 = vld [vmem:[%s1 + $0x60] sm:$0xff]
        %v175 = vld [vmem:[%s1 + $0x68] sm:$0xff]
        %v176 = vld [vmem:[%s1 + $0x70] sm:$0xff]
        %v177 = vld [vmem:[%s1 + $0x78] sm:$0xff]
        %v178 = vpack.c.bf16 %v163, %v162
        %v179 = vpack.c.bf16 %v165, %v164
        %v180 = vpack.c.bf16 %v167, %v166
        %v181 = vpack.c.bf16 %v169, %v168
        %v182 = vpack.c.bf16 %v171, %v170
        %v183 = vpack.c.bf16 %v173, %v172
        %v184 = vpack.c.bf16 %v175, %v174
        %v185 = vpack.c.bf16 %v177, %v176
        %186 = vst [vmem:[#allocation3] sm:$0xff] %v178
        %187 = vst [vmem:[#allocation3 + $0x8] sm:$0xff] %v179
        %188 = vst [vmem:[#allocation3 + $0x10] sm:$0xff] %v180
        %189 = vst [vmem:[#allocation3 + $0x18] sm:$0xff] %v181
        %190 = vst [vmem:[#allocation3 + $0x20] sm:$0xff] %v182
        %191 = vst [vmem:[#allocation3 + $0x28] sm:$0xff] %v183
        %192 = vst [vmem:[#allocation3 + $0x30] sm:$0xff] %v184
        %193 = vst [vmem:[#allocation3 + $0x38] sm:$0xff] %v185
      $region28: #{appnp_benx_forward.9} parent=23 // pred_fallthru
        _
      %s194 = sand.u32 %s17, 1
      %s195 = smul.u32 %s18, 128
      %s196 = sshra.s32 %s195, 4
      %s197 = sand.u32 %s195, 15
      %s198 = smul.addr %s196, 8
      %s199 = scalar_lea.vmem [#allocation2], %s198
      %v200 = vld [vmem:[%s199] sm:$0xff]
      %v201 = vld [vmem:[%s199 + $0x8] sm:$0xff]
      %v202 = vld [vmem:[%s199 + $0x10] sm:$0xff]
      %v203 = vld [vmem:[%s199 + $0x18] sm:$0xff]
      %v204 = vld [vmem:[%s199 + $0x20] sm:$0xff]
      %v205 = vld [vmem:[%s199 + $0x28] sm:$0xff]
      %v206 = vld [vmem:[%s199 + $0x30] sm:$0xff]
      %v207 = vld [vmem:[%s199 + $0x38] sm:$0xff]
      %s208 = smul.u32 %s194, 8
      %s209 = smul.addr %s208, 8
      %s210 = scalar_lea.vmem [#allocation3], %s209
      %v211 = vld [vmem:[%s210] sm:$0xff]
      %v212 = vld [vmem:[%s210 + $0x8] sm:$0xff]
      %v213 = vld [vmem:[%s210 + $0x10] sm:$0xff]
      %v214 = vld [vmem:[%s210 + $0x18] sm:$0xff]
      %v215 = vld [vmem:[%s210 + $0x20] sm:$0xff]
      %v216 = vld [vmem:[%s210 + $0x28] sm:$0xff]
      %v217 = vld [vmem:[%s210 + $0x30] sm:$0xff]
      %v218 = vld [vmem:[%s210 + $0x38] sm:$0xff]
      %s219 = scalar_lea.vmem %s1, %s195
      %v220 = vld [vmem:[%s219] sm:$0xff]
      %v221 = vld [vmem:[%s219 + $0x8] sm:$0xff]
      %v222 = vld [vmem:[%s219 + $0x10] sm:$0xff]
      %v223 = vld [vmem:[%s219 + $0x18] sm:$0xff]
      %v224 = vld [vmem:[%s219 + $0x20] sm:$0xff]
      %v225 = vld [vmem:[%s219 + $0x28] sm:$0xff]
      %v226 = vld [vmem:[%s219 + $0x30] sm:$0xff]
      %v227 = vld [vmem:[%s219 + $0x38] sm:$0xff]
      %v228 = vld [vmem:[%s219 + $0x40] sm:$0xff]
      %v229 = vld [vmem:[%s219 + $0x48] sm:$0xff]
      %v230 = vld [vmem:[%s219 + $0x50] sm:$0xff]
      %v231 = vld [vmem:[%s219 + $0x58] sm:$0xff]
      %v232 = vld [vmem:[%s219 + $0x60] sm:$0xff]
      %v233 = vld [vmem:[%s219 + $0x68] sm:$0xff]
      %v234 = vld [vmem:[%s219 + $0x70] sm:$0xff]
      %v235 = vld [vmem:[%s219 + $0x78] sm:$0xff]
      %v236 = vmul.f32 %v220, 0.1
      %v237 = vmul.f32 %v221, 0.1
      %v238 = vmul.f32 %v222, 0.1
      %v239 = vmul.f32 %v223, 0.1
      %v240 = vmul.f32 %v224, 0.1
      %v241 = vmul.f32 %v225, 0.1
      %v242 = vmul.f32 %v226, 0.1
      %v243 = vmul.f32 %v227, 0.1
      %v244 = vmul.f32 %v228, 0.1
      %v245 = vmul.f32 %v229, 0.1
      %v246 = vmul.f32 %v230, 0.1
      %v247 = vmul.f32 %v231, 0.1
      %v248 = vmul.f32 %v232, 0.1
      %v249 = vmul.f32 %v233, 0.1
      %v250 = vmul.f32 %v234, 0.1
      %v251 = vmul.f32 %v235, 0.1
      %252 = vmatprep.subr.bf16.mxu0 0
      %253 = vmatpush1.bf16.msra.mxu0 %v211
      %254 = vmatprep.subr.bf16.mxu0 0
      %255 = vmatpush1.bf16.msra.mxu0 %v212
      %256 = vmatprep.subr.bf16.mxu0 0
      %257 = vmatpush1.bf16.msra.mxu0 %v213
      %258 = vmatprep.subr.bf16.mxu0 0
      %259 = vmatpush1.bf16.msra.mxu0 %v214
      %260 = vmatprep.subr.bf16.mxu0 0
      %261 = vmatpush1.bf16.msra.mxu0 %v215
      %262 = vmatprep.subr.bf16.mxu0 0
      %263 = vmatpush1.bf16.msra.mxu0 %v216
      %264 = vmatprep.subr.bf16.mxu0 0
      %265 = vmatpush1.bf16.msra.mxu0 %v217
      %266 = vmatprep.subr.bf16.mxu0 0
      %267 = vmatpush1.bf16.msra.mxu0 %v218
      %268 = vmatprep.subr.bf16.mxu0 0
      %269 = vmatpush1.bf16.msra.mxu0 0
      %270 = vmatprep.subr.bf16.mxu0 0
      %271 = vmatpush1.bf16.msra.mxu0 0
      %272 = vmatprep.subr.bf16.mxu0 0
      %273 = vmatpush1.bf16.msra.mxu0 0
      %274 = vmatprep.subr.bf16.mxu0 0
      %275 = vmatpush1.bf16.msra.mxu0 0
      %276 = vmatprep.subr.bf16.mxu0 0
      %277 = vmatpush1.bf16.msra.mxu0 0
      %278 = vmatprep.subr.bf16.mxu0 0
      %279 = vmatpush1.bf16.msra.mxu0 0
      %280 = vmatprep.subr.bf16.mxu0 0
      %281 = vmatpush1.bf16.msra.mxu0 0
      %282 = vmatprep.subr.bf16.mxu0 0
      %283 = vmatpush1.bf16.msra.mxu0 0
      %284 = vmatprep.mubr.bf16.mxu0 0
      %285 = vmatmul.mubr.bf16.gmra.mrb[0].mxu0 %v200
      %v286 = vpop.f32.mrb[0].mxu0
      %v287 = vadd.f32 %v236, %v286
      %v288 = vpop.f32.mrb[0].mxu0
      %v289 = vpop.f32.mrb[0].mxu0
      %v290 = vadd.f32 %v237, %v289
      %v291 = vpop.f32.mrb[0].mxu0
      %292 = vmatprep.mubr.bf16.mxu0 0
      %293 = vmatmul.mubr.bf16.gmra.mrb[0].mxu0 %v201
      %v294 = vpop.f32.mrb[0].mxu0
      %v295 = vadd.f32 %v238, %v294
      %v296 = vpop.f32.mrb[0].mxu0
      %v297 = vpop.f32.mrb[0].mxu0
      %v298 = vadd.f32 %v239, %v297
      %v299 = vpop.f32.mrb[0].mxu0
      %300 = vmatprep.mubr.bf16.mxu0 0
      %301 = vmatmul.mubr.bf16.gmra.mrb[0].mxu0 %v202
      %v302 = vpop.f32.mrb[0].mxu0
      %v303 = vadd.f32 %v240, %v302
      %v304 = vpop.f32.mrb[0].mxu0
      %v305 = vpop.f32.mrb[0].mxu0
      %v306 = vadd.f32 %v241, %v305
      %v307 = vpop.f32.mrb[0].mxu0
      %308 = vmatprep.mubr.bf16.mxu0 0
      %309 = vmatmul.mubr.bf16.gmra.mrb[0].mxu0 %v203
      %v310 = vpop.f32.mrb[0].mxu0
      %v311 = vadd.f32 %v242, %v310
      %v312 = vpop.f32.mrb[0].mxu0
      %v313 = vpop.f32.mrb[0].mxu0
      %v314 = vadd.f32 %v243, %v313
      %v315 = vpop.f32.mrb[0].mxu0
      %316 = vmatprep.mubr.bf16.mxu0 0
      %317 = vmatmul.mubr.bf16.gmra.mrb[0].mxu0 %v204
      %v318 = vpop.f32.mrb[0].mxu0
      %v319 = vadd.f32 %v244, %v318
      %v320 = vpop.f32.mrb[0].mxu0
      %v321 = vpop.f32.mrb[0].mxu0
      %v322 = vadd.f32 %v245, %v321
      %v323 = vpop.f32.mrb[0].mxu0
      %324 = vmatprep.mubr.bf16.mxu0 0
      %325 = vmatmul.mubr.bf16.gmra.mrb[0].mxu0 %v205
      %v326 = vpop.f32.mrb[0].mxu0
      %v327 = vadd.f32 %v246, %v326
      %v328 = vpop.f32.mrb[0].mxu0
      %v329 = vpop.f32.mrb[0].mxu0
      %v330 = vadd.f32 %v247, %v329
      %v331 = vpop.f32.mrb[0].mxu0
      %332 = vmatprep.mubr.bf16.mxu0 0
      %333 = vmatmul.mubr.bf16.gmra.mrb[0].mxu0 %v206
      %v334 = vpop.f32.mrb[0].mxu0
      %v335 = vadd.f32 %v248, %v334
      %v336 = vpop.f32.mrb[0].mxu0
      %v337 = vpop.f32.mrb[0].mxu0
      %v338 = vadd.f32 %v249, %v337
      %v339 = vpop.f32.mrb[0].mxu0
      %340 = vmatprep.mubr.bf16.mxu0 0
      %341 = vmatmul.mubr.bf16.gmra.mrb[0].mxu0 %v207
      %v342 = vpop.f32.mrb[0].mxu0
      %v343 = vadd.f32 %v250, %v342
      %v344 = vpop.f32.mrb[0].mxu0
      %v345 = vpop.f32.mrb[0].mxu0
      %v346 = vadd.f32 %v251, %v345
      %v347 = vpop.f32.mrb[0].mxu0
      %348 = vdwg.mxu0
      %v349 = vpack.c.bf16 %v290, %v287
      %v350 = vpack.c.bf16 %v298, %v295
      %v351 = vpack.c.bf16 %v306, %v303
      %v352 = vpack.c.bf16 %v314, %v311
      %v353 = vpack.c.bf16 %v322, %v319
      %v354 = vpack.c.bf16 %v330, %v327
      %v355 = vpack.c.bf16 %v338, %v335
      %v356 = vpack.c.bf16 %v346, %v343
      %s357 = ssub.s32 1, %s194
      %s358 = smul.u32 %s357, 8
      %s359 = sadd.s32 %s196, %s358
      %s360 = smul.addr %s359, 8
      %s361 = scalar_lea.vmem [#allocation3], %s360
      %362 = vst [vmem:[%s361] sm:$0xff] %v349
      %363 = vst [vmem:[%s361 + $0x8] sm:$0xff] %v350
      %364 = vst [vmem:[%s361 + $0x10] sm:$0xff] %v351
      %365 = vst [vmem:[%s361 + $0x18] sm:$0xff] %v352
      %366 = vst [vmem:[%s361 + $0x20] sm:$0xff] %v353
      %367 = vst [vmem:[%s361 + $0x28] sm:$0xff] %v354
      %368 = vst [vmem:[%s361 + $0x30] sm:$0xff] %v355
      %369 = vst [vmem:[%s361 + $0x38] sm:$0xff] %v356
      %p370 = scmp.eq.s32.totalorder %s17, 9
      // Predicated region
      $region63: #{appnp_benx_forward.9} parent=23 // pred_check
        %p371 = pneg %p370
      $region64: #{appnp_benx_forward.9} parent=23 // pred_check_branch
        %373 = sbr.rel (%p371) target = $region66
      $region65: #{appnp_benx_forward.9} parent=23 // pred_region
        %s374 = scalar_lea.vmem %s2, %s195
        %375 = vst [vmem:[%s374] sm:$0xff] %v287
        %376 = vst [vmem:[%s374 + $0x8] sm:$0xff] %v290
        %377 = vst [vmem:[%s374 + $0x10] sm:$0xff] %v295
        %378 = vst [vmem:[%s374 + $0x18] sm:$0xff] %v298
        %379 = vst [vmem:[%s374 + $0x20] sm:$0xff] %v303
        %380 = vst [vmem:[%s374 + $0x28] sm:$0xff] %v306
        %381 = vst [vmem:[%s374 + $0x30] sm:$0xff] %v311
        %382 = vst [vmem:[%s374 + $0x38] sm:$0xff] %v314
        %383 = vst [vmem:[%s374 + $0x40] sm:$0xff] %v319
        %384 = vst [vmem:[%s374 + $0x48] sm:$0xff] %v322
        %385 = vst [vmem:[%s374 + $0x50] sm:$0xff] %v327
        %386 = vst [vmem:[%s374 + $0x58] sm:$0xff] %v330
        %387 = vst [vmem:[%s374 + $0x60] sm:$0xff] %v335
        %388 = vst [vmem:[%s374 + $0x68] sm:$0xff] %v338
        %389 = vst [vmem:[%s374 + $0x70] sm:$0xff] %v343
        %390 = vst [vmem:[%s374 + $0x78] sm:$0xff] %v346
      $region66: #{appnp_benx_forward.9} parent=23 // pred_fallthru
        _
      // Predicated region
      $region67: #{appnp_benx_forward.9} parent=23 // pred_check
        %p391 = pneg %p59
      $region68: #{appnp_benx_forward.9} parent=23 // pred_check_branch
        %393 = sbr.rel (%p391) target = $region70
      $region69: #{appnp_benx_forward.9} parent=23 // pred_region
        _
      $region70: #{appnp_benx_forward.9} parent=23 // pred_fallthru
        _
      // Predicated region
      $region71: #{appnp_benx_forward.9} parent=23 // pred_check
        %p394 = pneg %p59
      $region72: #{appnp_benx_forward.9} parent=23 // pred_check_branch
        %396 = sbr.rel (%p394) target = $region74
      $region73: #{appnp_benx_forward.9} parent=23 // pred_region
        _
      $region74: #{appnp_benx_forward.9} parent=23 // pred_fallthru
        _
    $region24: #{appnp_benx_forward.9} parent=5 // pred_fallthru
      _
    %p397 = scmp.le.s32.totalorder 2, %s8
    // Predicated region
    $region75: #{appnp_benx_forward.9} parent=5 // pred_check
      %p398 = pneg %p397
    $region76: #{appnp_benx_forward.9} parent=5 // pred_check_branch
      %400 = sbr.rel (%p398) target = $region78
    $region77: #{appnp_benx_forward.9} parent=5 // pred_region
      %s401 = ssub.s32 %s8, 2
    $region78: #{appnp_benx_forward.9} parent=5 // pred_fallthru
      _
  $region6: #{appnp_benx_forward.9} parent=0 // loop_footer
    %s12 = sadd.s32 1, %s8
  $region7: #{appnp_benx_forward.9} parent=0 // loop_footer_branch
    %7 = sbr.rel target = $region3
  $region8: #{appnp_benx_forward.9} parent=0 // loop_exit
    _
  %402 = vsyncmov [#allocation4]
  %s403 = vpop.sfrf %402
  %p404 = scmp.eq.s32.totalorder %s403, 0
  %p405 = pneg %p404
  %407 = shalt.err (%p405)

// kernel: appnp_benx_forward.6
$region0: #{appnp_benx_forward.6}
  #allocation0 [shape = 'u32[]', space=smem, size = 0x4, offset = 0x4, fixed_abs, tag = 'smem constant byte address 0x4 - core index']
  #allocation1 [shape = 'u32[144,128]{1,0:T(1,128)}', space=vmem, size = 0x12000, scoped, tag = 'internal scratch']
  #allocation2 [shape = 'bf16[128,128]{1,0:T(16,128)(2,1)}', space=vmem, size = 0x8000, scoped, tag = 'scratch operand']
  #allocation3 [shape = 'bf16[2,128,128]{2,1,0:T(16,128)(2,1)}', space=vmem, size = 0x10000, scoped, tag = 'scratch operand']
  #allocation4 [shape = 's32[1]{0}', space=sflag, size = 0x4, scoped, tag = 'scratch operand']
  #allocation5 [shape = 's32[]', space=sflag, size = 0x4, offset = 0, fixed_abs, tag = 'sflag constant byte address 0x0 - dummy sync flag']
  %s0 = inlined_call_operand.vmem [shape: bf16[128,128], index: 0, kind: input, shape index: {}]
  %s1 = inlined_call_operand.vmem [shape: f32[128,128], index: 1, kind: input, shape index: {}]
  %s2 = inlined_call_operand.vmem [shape: f32[128,128], index: 2, kind: output, shape index: {}]
  %s3 = sld [smem:[#allocation0]]
  $region79: #{appnp_benx_forward.6} parent=0
    _
  %s5 = ssub.s32 1, %s3
  %s6 = scalar_select 0, %s5, %s3
  loop: start=0, step=1, limit=12
  $region2: #{appnp_benx_forward.6} parent=0 // loop_pre_header
    _
  $region3: #{appnp_benx_forward.6} parent=0 // loop_header
    %s8 = sphi 0, %s12
    %p9 = scmp.ge.s32.totalorder %s8, 12
    %s15 = sphi 0, %s27
    %s16 = sphi 0, %s23
    %s17 = sphi 0, %s15
    %s18 = sphi 0, %s16
    %s19 = sphi 0, %s17
    %s20 = sphi 0, %s18
    %s28 = sphi 0, %s28
    %s30 = sphi 0, %s28
    %s31 = sphi 0, %s30
    %s45 = sphi 0, %s31
    %s49 = sphi 0, %s49
    %s51 = sphi 0, %s49
    %s52 = sphi 0, %s51
    %s66 = sphi 0, %s52
  $region4: #{appnp_benx_forward.6} parent=0 // loop_header_branch
    %11 = sbr.rel (%p9) target = $region8
  $region5: #{appnp_benx_forward.6} parent=0 // loop_body
    %s13 = ssub.s32 %s8, 1
    %s14 = ssub.s32 %s8, 2
    %s21 = sadd.s32 1, %s16
    %p22 = scmp.ge.s32.totalorder %s21, 1
    %s23 = scalar_select %p22, 0, %s21
    %s24 = sadd.s32 1, %s15
    %s25 = scalar_select %p22, %s24, %s15
    %p26 = scmp.ge.s32.totalorder %s25, 10
    %s27 = scalar_select %p26, 0, %s25
    %s29 = sadd.s32 %s28, 1
    %p32 = scmp.eq.s32.totalorder %s8, 9
    %p33 = scmp.ne.s32.totalorder %s28, %s30
    %p34 = scmp.eq.s32.totalorder %s8, 0
    %p35 = por %p33, %p34
    %p36 = scmp.ne.s32.totalorder %s28, %s30
    %p37 = scmp.eq.s32.totalorder %s13, 9
    %p38 = por %p36, %p37
    %p39 = scmp.ne.s32.totalorder %s30, %s31
    %p40 = scmp.eq.s32.totalorder %s13, 0
    %p41 = por %p39, %p40
    %p42 = scmp.ne.s32.totalorder %s30, %s31
    %p43 = scmp.eq.s32.totalorder %s14, 9
    %p44 = por %p42, %p43
    %p46 = scmp.ne.s32.totalorder %s31, %s45
    %p47 = scmp.eq.s32.totalorder %s14, 0
    %p48 = por %p46, %p47
    %s50 = sadd.s32 %s49, 1
    %p53 = scmp.eq.s32.totalorder %s8, 9
    %p54 = scmp.ne.s32.totalorder %s49, %s51
    %p55 = scmp.eq.s32.totalorder %s8, 0
    %p56 = por %p54, %p55
    %p57 = scmp.ne.s32.totalorder %s49, %s51
    %p58 = scmp.eq.s32.totalorder %s13, 9
    %p59 = por %p57, %p58
    %p60 = scmp.ne.s32.totalorder %s51, %s52
    %p61 = scmp.eq.s32.totalorder %s13, 0
    %p62 = por %p60, %p61
    %p63 = scmp.ne.s32.totalorder %s51, %s52
    %p64 = scmp.eq.s32.totalorder %s14, 9
    %p65 = por %p63, %p64
    %p67 = scmp.ne.s32.totalorder %s52, %s66
    %p68 = scmp.eq.s32.totalorder %s14, 0
    %p69 = por %p67, %p68
    %p70 = scmp.le.s32.totalorder 1, %s8
    %p71 = scmp.lt.s32.totalorder %s8, 11
    %p72 = pnand %p70, %p71
    %p73 = pneg %p72
    // Predicated region
    $region9: #{appnp_benx_forward.6} parent=5 // pred_check
      _
    $region10: #{appnp_benx_forward.6} parent=5 // pred_check_branch
      %75 = sbr.rel (%p72) target = $region12
    $region11: #{appnp_benx_forward.6} parent=5 // pred_region
      %s76 = ssub.s32 %s8, 1
      // Predicated region
      $region13: #{appnp_benx_forward.6} parent=11 // pred_check
        %p77 = pneg %p41
      $region14: #{appnp_benx_forward.6} parent=11 // pred_check_branch
        %79 = sbr.rel (%p77) target = $region16
      $region15: #{appnp_benx_forward.6} parent=11 // pred_region
        _
      $region16: #{appnp_benx_forward.6} parent=11 // pred_fallthru
        _
    $region12: #{appnp_benx_forward.6} parent=5 // pred_fallthru
      _
    %p80 = scmp.lt.s32.totalorder %s8, 10
    // Predicated region
    $region17: #{appnp_benx_forward.6} parent=5 // pred_check
      %p81 = pneg %p80
    $region18: #{appnp_benx_forward.6} parent=5 // pred_check_branch
      %83 = sbr.rel (%p81) target = $region20
    $region19: #{appnp_benx_forward.6} parent=5 // pred_region
      _
    $region20: #{appnp_benx_forward.6} parent=5 // pred_fallthru
      _
    %p84 = scmp.le.s32.totalorder 1, %s8
    %p85 = scmp.lt.s32.totalorder %s8, 11
    %p86 = pnand %p84, %p85
    %p87 = pneg %p86
    // Predicated region
    $region21: #{appnp_benx_forward.6} parent=5 // pred_check
      _
    $region22: #{appnp_benx_forward.6} parent=5 // pred_check_branch
      %89 = sbr.rel (%p86) target = $region24
    $region23: #{appnp_benx_forward.6} parent=5 // pred_region
      %s90 = ssub.s32 %s8, 1
      %p91 = pneg %p41
      %p92 = pneg %p38
      %p93 = pneg %p62
      %p94 = pneg %p59
      %p96 = scmp.eq.s32.totalorder %s17, 0
      %p97 = scmp.eq.s32.totalorder %s18, 0
      %p98 = pnand %p96, %p97
      %p99 = pneg %p98
      // Predicated region
      $region25: #{appnp_benx_forward.6} parent=23 // pred_check
        _
      $region26: #{appnp_benx_forward.6} parent=23 // pred_check_branch
        %101 = sbr.rel (%p98) target = $region28
      $region27: #{appnp_benx_forward.6} parent=23 // pred_region
        %p103 = scmp.lt.u32.totalorder 64, 8
        %p104 = pneg %p103
        // Predicated region
        $region29: #{appnp_benx_forward.6} parent=27 // pred_check
          _
        $region30: #{appnp_benx_forward.6} parent=27 // pred_check_branch
          %106 = sbr.rel (%p103) target = $region32
        $region31: #{appnp_benx_forward.6} parent=27 // pred_region
          %s121 = sand.u32 64, 7
          %p122 = scmp.eq.s32.totalorder %s121, 0
          // Predicated region
          $region44: #{appnp_benx_forward.6} parent=31 // pred_check
            %p123 = pneg %p122
          $region45: #{appnp_benx_forward.6} parent=31 // pred_check_branch
            %125 = sbr.rel (%p123) target = $region47
          $region46: #{appnp_benx_forward.6} parent=31 // pred_region
            loop: start=0, step=1, limit=1
            $region48: #{appnp_benx_forward.6} parent=46 // loop_pre_header
              _
            $region49: #{appnp_benx_forward.6} parent=46 // loop_header
              %s127 = sphi 0, %s131
              %p128 = scmp.ge.s32.totalorder %s127, 1
              %s132 = sphi %s0, %s0
              %s133 = sphi [#allocation2], [#allocation2]
            $region50: #{appnp_benx_forward.6} parent=46 // loop_header_branch
              %130 = sbr.rel (%p128) target = $region54
            $region51: #{appnp_benx_forward.6} parent=46 // loop_body
              %v134 = vld [vmem:[%s132] sm:$0xff]
              %135 = vst [vmem:[%s133] sm:$0xff] %v134
              %v136 = vld [vmem:[%s132 + $0x8] sm:$0xff]
              %137 = vst [vmem:[%s133 + $0x8] sm:$0xff] %v136
              %v138 = vld [vmem:[%s132 + $0x10] sm:$0xff]
              %139 = vst [vmem:[%s133 + $0x10] sm:$0xff] %v138
              %v140 = vld [vmem:[%s132 + $0x18] sm:$0xff]
              %141 = vst [vmem:[%s133 + $0x18] sm:$0xff] %v140
              %v142 = vld [vmem:[%s132 + $0x20] sm:$0xff]
              %143 = vst [vmem:[%s133 + $0x20] sm:$0xff] %v142
              %v144 = vld [vmem:[%s132 + $0x28] sm:$0xff]
              %145 = vst [vmem:[%s133 + $0x28] sm:$0xff] %v144
              %v146 = vld [vmem:[%s132 + $0x30] sm:$0xff]
              %147 = vst [vmem:[%s133 + $0x30] sm:$0xff] %v146
              %v148 = vld [vmem:[%s132 + $0x38] sm:$0xff]
              %149 = vst [vmem:[%s133 + $0x38] sm:$0xff] %v148
            $region52: #{appnp_benx_forward.6} parent=46 // loop_footer
              %s131 = sadd.s32 1, %s127
            $region53: #{appnp_benx_forward.6} parent=46 // loop_footer_branch
              %126 = sbr.rel target = $region49
            $region54: #{appnp_benx_forward.6} parent=46 // loop_exit
              _
          $region47: #{appnp_benx_forward.6} parent=31 // pred_fallthru
            _
          %p150 = pneg %p122
          // Predicated region
          $region55: #{appnp_benx_forward.6} parent=31 // pred_check
            _
          $region56: #{appnp_benx_forward.6} parent=31 // pred_check_branch
            %152 = sbr.rel (%p122) target = $region58
          $region57: #{appnp_benx_forward.6} parent=31 // pred_region
            %s153 = sand.u32 64, 7
          $region58: #{appnp_benx_forward.6} parent=31 // pred_fallthru
            _
        $region32: #{appnp_benx_forward.6} parent=27 // pred_fallthru
          _
        // Predicated region
        $region33: #{appnp_benx_forward.6} parent=27 // pred_check
          %p107 = pneg %p103
        $region34: #{appnp_benx_forward.6} parent=27 // pred_check_branch
          %109 = sbr.rel (%p107) target = $region36
        $region35: #{appnp_benx_forward.6} parent=27 // pred_region
          %s110 = sshllo.u32 0, 64
          loop: start=0, step=1, limit=1
          $region37: #{appnp_benx_forward.6} parent=35 // loop_pre_header
            _
          $region38: #{appnp_benx_forward.6} parent=35 // loop_header
            %s112 = sphi 0, %s116
            %p113 = scmp.ge.s32.totalorder %s112, 1
            %s117 = sphi %s0, %s0
            %s118 = sphi [#allocation2], [#allocation2]
          $region39: #{appnp_benx_forward.6} parent=35 // loop_header_branch
            %115 = sbr.rel (%p113) target = $region43
          $region40: #{appnp_benx_forward.6} parent=35 // loop_body
            %v119 = vld [vmem:[%s117] sm:%s110]
            %120 = vst [vmem:[%s118] sm:%s110] %v119
          $region41: #{appnp_benx_forward.6} parent=35 // loop_footer
            %s116 = sadd.s32 1, %s112
          $region42: #{appnp_benx_forward.6} parent=35 // loop_footer_branch
            %111 = sbr.rel target = $region38
          $region43: #{appnp_benx_forward.6} parent=35 // loop_exit
            _
        $region36: #{appnp_benx_forward.6} parent=27 // pred_fallthru
          _
        // Predicated region
        $region59: #{appnp_benx_forward.6} parent=27 // pred_check
          _
        $region60: #{appnp_benx_forward.6} parent=27 // pred_check_branch
          %156 = sbr.rel (0) target = $region62
        $region61: #{appnp_benx_forward.6} parent=27 // pred_region
          %157 = vsyncadd [#allocation4], 1024
        $region62: #{appnp_benx_forward.6} parent=27 // pred_fallthru
          _
        %s158 = smul.u32 4, 16
        %s159 = smul.u32 %s158, 1
        %s160 = sshll.u32 %s159, 4
        %161 = dma.done [#allocation4], %s160
        %v162 = vld [vmem:[%s1] sm:$0xff]
        %v163 = vld [vmem:[%s1 + $0x8] sm:$0xff]
        %v164 = vld [vmem:[%s1 + $0x10] sm:$0xff]
        %v165 = vld [vmem:[%s1 + $0x18] sm:$0xff]
        %v166 = vld [vmem:[%s1 + $0x20] sm:$0xff]
        %v167 = vld [vmem:[%s1 + $0x28] sm:$0xff]
        %v168 = vld [vmem:[%s1 + $0x30] sm:$0xff]
        %v169 = vld [vmem:[%s1 + $0x38] sm:$0xff]
        %v170 = vld [vmem:[%s1 + $0x40] sm:$0xff]
        %v171 = vld [vmem:[%s1 + $0x48] sm:$0xff]
        %v172 = vld [vmem:[%s1 + $0x50] sm:$0xff]
        %v173 = vld [vmem:[%s1 + $0x58] sm:$0xff]
        %v174 = vld [vmem:[%s1 + $0x60] sm:$0xff]
        %v175 = vld [vmem:[%s1 + $0x68] sm:$0xff]
        %v176 = vld [vmem:[%s1 + $0x70] sm:$0xff]
        %v177 = vld [vmem:[%s1 + $0x78] sm:$0xff]
        %v178 = vpack.c.bf16 %v163, %v162
        %v179 = vpack.c.bf16 %v165, %v164
        %v180 = vpack.c.bf16 %v167, %v166
        %v181 = vpack.c.bf16 %v169, %v168
        %v182 = vpack.c.bf16 %v171, %v170
        %v183 = vpack.c.bf16 %v173, %v172
        %v184 = vpack.c.bf16 %v175, %v174
        %v185 = vpack.c.bf16 %v177, %v176
        %186 = vst [vmem:[#allocation3] sm:$0xff] %v178
        %187 = vst [vmem:[#allocation3 + $0x8] sm:$0xff] %v179
        %188 = vst [vmem:[#allocation3 + $0x10] sm:$0xff] %v180
        %189 = vst [vmem:[#allocation3 + $0x18] sm:$0xff] %v181
        %190 = vst [vmem:[#allocation3 + $0x20] sm:$0xff] %v182
        %191 = vst [vmem:[#allocation3 + $0x28] sm:$0xff] %v183
        %192 = vst [vmem:[#allocation3 + $0x30] sm:$0xff] %v184
        %193 = vst [vmem:[#allocation3 + $0x38] sm:$0xff] %v185
      $region28: #{appnp_benx_forward.6} parent=23 // pred_fallthru
        _
      %s194 = sand.u32 %s17, 1
      %s195 = smul.u32 %s18, 128
      %s196 = sshra.s32 %s195, 4
      %s197 = sand.u32 %s195, 15
      %s198 = smul.addr %s196, 8
      %s199 = scalar_lea.vmem [#allocation2], %s198
      %v200 = vld [vmem:[%s199] sm:$0xff]
      %v201 = vld [vmem:[%s199 + $0x8] sm:$0xff]
      %v202 = vld [vmem:[%s199 + $0x10] sm:$0xff]
      %v203 = vld [vmem:[%s199 + $0x18] sm:$0xff]
      %v204 = vld [vmem:[%s199 + $0x20] sm:$0xff]
      %v205 = vld [vmem:[%s199 + $0x28] sm:$0xff]
      %v206 = vld [vmem:[%s199 + $0x30] sm:$0xff]
      %v207 = vld [vmem:[%s199 + $0x38] sm:$0xff]
      %s208 = smul.u32 %s194, 8
      %s209 = smul.addr %s208, 8
      %s210 = scalar_lea.vmem [#allocation3], %s209
      %v211 = vld [vmem:[%s210] sm:$0xff]
      %v212 = vld [vmem:[%s210 + $0x8] sm:$0xff]
      %v213 = vld [vmem:[%s210 + $0x10] sm:$0xff]
      %v214 = vld [vmem:[%s210 + $0x18] sm:$0xff]
      %v215 = vld [vmem:[%s210 + $0x20] sm:$0xff]
      %v216 = vld [vmem:[%s210 + $0x28] sm:$0xff]
      %v217 = vld [vmem:[%s210 + $0x30] sm:$0xff]
      %v218 = vld [vmem:[%s210 + $0x38] sm:$0xff]
      %s219 = scalar_lea.vmem %s1, %s195
      %v220 = vld [vmem:[%s219] sm:$0xff]
      %v221 = vld [vmem:[%s219 + $0x8] sm:$0xff]
      %v222 = vld [vmem:[%s219 + $0x10] sm:$0xff]
      %v223 = vld [vmem:[%s219 + $0x18] sm:$0xff]
      %v224 = vld [vmem:[%s219 + $0x20] sm:$0xff]
      %v225 = vld [vmem:[%s219 + $0x28] sm:$0xff]
      %v226 = vld [vmem:[%s219 + $0x30] sm:$0xff]
      %v227 = vld [vmem:[%s219 + $0x38] sm:$0xff]
      %v228 = vld [vmem:[%s219 + $0x40] sm:$0xff]
      %v229 = vld [vmem:[%s219 + $0x48] sm:$0xff]
      %v230 = vld [vmem:[%s219 + $0x50] sm:$0xff]
      %v231 = vld [vmem:[%s219 + $0x58] sm:$0xff]
      %v232 = vld [vmem:[%s219 + $0x60] sm:$0xff]
      %v233 = vld [vmem:[%s219 + $0x68] sm:$0xff]
      %v234 = vld [vmem:[%s219 + $0x70] sm:$0xff]
      %v235 = vld [vmem:[%s219 + $0x78] sm:$0xff]
      %v236 = vmul.f32 %v220, 0.1
      %v237 = vmul.f32 %v221, 0.1
      %v238 = vmul.f32 %v222, 0.1
      %v239 = vmul.f32 %v223, 0.1
      %v240 = vmul.f32 %v224, 0.1
      %v241 = vmul.f32 %v225, 0.1
      %v242 = vmul.f32 %v226, 0.1
      %v243 = vmul.f32 %v227, 0.1
      %v244 = vmul.f32 %v228, 0.1
      %v245 = vmul.f32 %v229, 0.1
      %v246 = vmul.f32 %v230, 0.1
      %v247 = vmul.f32 %v231, 0.1
      %v248 = vmul.f32 %v232, 0.1
      %v249 = vmul.f32 %v233, 0.1
      %v250 = vmul.f32 %v234, 0.1
      %v251 = vmul.f32 %v235, 0.1
      %252 = vmatprep.subr.bf16.mxu0 0
      %253 = vmatpush1.bf16.msra.mxu0 %v211
      %254 = vmatprep.subr.bf16.mxu0 0
      %255 = vmatpush1.bf16.msra.mxu0 %v212
      %256 = vmatprep.subr.bf16.mxu0 0
      %257 = vmatpush1.bf16.msra.mxu0 %v213
      %258 = vmatprep.subr.bf16.mxu0 0
      %259 = vmatpush1.bf16.msra.mxu0 %v214
      %260 = vmatprep.subr.bf16.mxu0 0
      %261 = vmatpush1.bf16.msra.mxu0 %v215
      %262 = vmatprep.subr.bf16.mxu0 0
      %263 = vmatpush1.bf16.msra.mxu0 %v216
      %264 = vmatprep.subr.bf16.mxu0 0
      %265 = vmatpush1.bf16.msra.mxu0 %v217
      %266 = vmatprep.subr.bf16.mxu0 0
      %267 = vmatpush1.bf16.msra.mxu0 %v218
      %268 = vmatprep.subr.bf16.mxu0 0
      %269 = vmatpush1.bf16.msra.mxu0 0
      %270 = vmatprep.subr.bf16.mxu0 0
      %271 = vmatpush1.bf16.msra.mxu0 0
      %272 = vmatprep.subr.bf16.mxu0 0
      %273 = vmatpush1.bf16.msra.mxu0 0
      %274 = vmatprep.subr.bf16.mxu0 0
      %275 = vmatpush1.bf16.msra.mxu0 0
      %276 = vmatprep.subr.bf16.mxu0 0
      %277 = vmatpush1.bf16.msra.mxu0 0
      %278 = vmatprep.subr.bf16.mxu0 0
      %279 = vmatpush1.bf16.msra.mxu0 0
      %280 = vmatprep.subr.bf16.mxu0 0
      %281 = vmatpush1.bf16.msra.mxu0 0
      %282 = vmatprep.subr.bf16.mxu0 0
      %283 = vmatpush1.bf16.msra.mxu0 0
      %284 = vmatprep.mubr.bf16.mxu0 0
      %285 = vmatmul.mubr.bf16.gmra.mrb[0].mxu0 %v200
      %v286 = vpop.f32.mrb[0].mxu0
      %v287 = vadd.f32 %v236, %v286
      %v288 = vpop.f32.mrb[0].mxu0
      %v289 = vpop.f32.mrb[0].mxu0
      %v290 = vadd.f32 %v237, %v289
      %v291 = vpop.f32.mrb[0].mxu0
      %292 = vmatprep.mubr.bf16.mxu0 0
      %293 = vmatmul.mubr.bf16.gmra.mrb[0].mxu0 %v201
      %v294 = vpop.f32.mrb[0].mxu0
      %v295 = vadd.f32 %v238, %v294
      %v296 = vpop.f32.mrb[0].mxu0
      %v297 = vpop.f32.mrb[0].mxu0
      %v298 = vadd.f32 %v239, %v297
      %v299 = vpop.f32.mrb[0].mxu0
      %300 = vmatprep.mubr.bf16.mxu0 0
      %301 = vmatmul.mubr.bf16.gmra.mrb[0].mxu0 %v202
      %v302 = vpop.f32.mrb[0].mxu0
      %v303 = vadd.f32 %v240, %v302
      %v304 = vpop.f32.mrb[0].mxu0
      %v305 = vpop.f32.mrb[0].mxu0
      %v306 = vadd.f32 %v241, %v305
      %v307 = vpop.f32.mrb[0].mxu0
      %308 = vmatprep.mubr.bf16.mxu0 0
      %309 = vmatmul.mubr.bf16.gmra.mrb[0].mxu0 %v203
      %v310 = vpop.f32.mrb[0].mxu0
      %v311 = vadd.f32 %v242, %v310
      %v312 = vpop.f32.mrb[0].mxu0
      %v313 = vpop.f32.mrb[0].mxu0
      %v314 = vadd.f32 %v243, %v313
      %v315 = vpop.f32.mrb[0].mxu0
      %316 = vmatprep.mubr.bf16.mxu0 0
      %317 = vmatmul.mubr.bf16.gmra.mrb[0].mxu0 %v204
      %v318 = vpop.f32.mrb[0].mxu0
      %v319 = vadd.f32 %v244, %v318
      %v320 = vpop.f32.mrb[0].mxu0
      %v321 = vpop.f32.mrb[0].mxu0
      %v322 = vadd.f32 %v245, %v321
      %v323 = vpop.f32.mrb[0].mxu0
      %324 = vmatprep.mubr.bf16.mxu0 0
      %325 = vmatmul.mubr.bf16.gmra.mrb[0].mxu0 %v205
      %v326 = vpop.f32.mrb[0].mxu0
      %v327 = vadd.f32 %v246, %v326
      %v328 = vpop.f32.mrb[0].mxu0
      %v329 = vpop.f32.mrb[0].mxu0
      %v330 = vadd.f32 %v247, %v329
      %v331 = vpop.f32.mrb[0].mxu0
      %332 = vmatprep.mubr.bf16.mxu0 0
      %333 = vmatmul.mubr.bf16.gmra.mrb[0].mxu0 %v206
      %v334 = vpop.f32.mrb[0].mxu0
      %v335 = vadd.f32 %v248, %v334
      %v336 = vpop.f32.mrb[0].mxu0
      %v337 = vpop.f32.mrb[0].mxu0
      %v338 = vadd.f32 %v249, %v337
      %v339 = vpop.f32.mrb[0].mxu0
      %340 = vmatprep.mubr.bf16.mxu0 0
      %341 = vmatmul.mubr.bf16.gmra.mrb[0].mxu0 %v207
      %v342 = vpop.f32.mrb[0].mxu0
      %v343 = vadd.f32 %v250, %v342
      %v344 = vpop.f32.mrb[0].mxu0
      %v345 = vpop.f32.mrb[0].mxu0
      %v346 = vadd.f32 %v251, %v345
      %v347 = vpop.f32.mrb[0].mxu0
      %348 = vdwg.mxu0
      %v349 = vpack.c.bf16 %v290, %v287
      %v350 = vpack.c.bf16 %v298, %v295
      %v351 = vpack.c.bf16 %v306, %v303
      %v352 = vpack.c.bf16 %v314, %v311
      %v353 = vpack.c.bf16 %v322, %v319
      %v354 = vpack.c.bf16 %v330, %v327
      %v355 = vpack.c.bf16 %v338, %v335
      %v356 = vpack.c.bf16 %v346, %v343
      %s357 = ssub.s32 1, %s194
      %s358 = smul.u32 %s357, 8
      %s359 = sadd.s32 %s196, %s358
      %s360 = smul.addr %s359, 8
      %s361 = scalar_lea.vmem [#allocation3], %s360
      %362 = vst [vmem:[%s361] sm:$0xff] %v349
      %363 = vst [vmem:[%s361 + $0x8] sm:$0xff] %v350
      %364 = vst [vmem:[%s361 + $0x10] sm:$0xff] %v351
      %365 = vst [vmem:[%s361 + $0x18] sm:$0xff] %v352
      %366 = vst [vmem:[%s361 + $0x20] sm:$0xff] %v353
      %367 = vst [vmem:[%s361 + $0x28] sm:$0xff] %v354
      %368 = vst [vmem:[%s361 + $0x30] sm:$0xff] %v355
      %369 = vst [vmem:[%s361 + $0x38] sm:$0xff] %v356
      %p370 = scmp.eq.s32.totalorder %s17, 9
      // Predicated region
      $region63: #{appnp_benx_forward.6} parent=23 // pred_check
        %p371 = pneg %p370
      $region64: #{appnp_benx_forward.6} parent=23 // pred_check_branch
        %373 = sbr.rel (%p371) target = $region66
      $region65: #{appnp_benx_forward.6} parent=23 // pred_region
        %v374 = vmax.f32 %v287, 0.0
        %v375 = vmax.f32 %v290, 0.0
        %v376 = vmax.f32 %v295, 0.0
        %v377 = vmax.f32 %v298, 0.0
        %v378 = vmax.f32 %v303, 0.0
        %v379 = vmax.f32 %v306, 0.0
        %v380 = vmax.f32 %v311, 0.0
        %v381 = vmax.f32 %v314, 0.0
        %v382 = vmax.f32 %v319, 0.0
        %v383 = vmax.f32 %v322, 0.0
        %v384 = vmax.f32 %v327, 0.0
        %v385 = vmax.f32 %v330, 0.0
        %v386 = vmax.f32 %v335, 0.0
        %v387 = vmax.f32 %v338, 0.0
        %v388 = vmax.f32 %v343, 0.0
        %v389 = vmax.f32 %v346, 0.0
        %s390 = scalar_lea.vmem %s2, %s195
        %391 = vst [vmem:[%s390] sm:$0xff] %v374
        %392 = vst [vmem:[%s390 + $0x8] sm:$0xff] %v375
        %393 = vst [vmem:[%s390 + $0x10] sm:$0xff] %v376
        %394 = vst [vmem:[%s390 + $0x18] sm:$0xff] %v377
        %395 = vst [vmem:[%s390 + $0x20] sm:$0xff] %v378
        %396 = vst [vmem:[%s390 + $0x28] sm:$0xff] %v379
        %397 = vst [vmem:[%s390 + $0x30] sm:$0xff] %v380
        %398 = vst [vmem:[%s390 + $0x38] sm:$0xff] %v381
        %399 = vst [vmem:[%s390 + $0x40] sm:$0xff] %v382
        %400 = vst [vmem:[%s390 + $0x48] sm:$0xff] %v383
        %401 = vst [vmem:[%s390 + $0x50] sm:$0xff] %v384
        %402 = vst [vmem:[%s390 + $0x58] sm:$0xff] %v385
        %403 = vst [vmem:[%s390 + $0x60] sm:$0xff] %v386
        %404 = vst [vmem:[%s390 + $0x68] sm:$0xff] %v387
        %405 = vst [vmem:[%s390 + $0x70] sm:$0xff] %v388
        %406 = vst [vmem:[%s390 + $0x78] sm:$0xff] %v389
      $region66: #{appnp_benx_forward.6} parent=23 // pred_fallthru
        _
      // Predicated region
      $region67: #{appnp_benx_forward.6} parent=23 // pred_check
        %p407 = pneg %p59
      $region68: #{appnp_benx_forward.6} parent=23 // pred_check_branch
        %409 = sbr.rel (%p407) target = $region70
      $region69: #{appnp_benx_forward.6} parent=23 // pred_region
        _
      $region70: #{appnp_benx_forward.6} parent=23 // pred_fallthru
        _
      // Predicated region
      $region71: #{appnp_benx_forward.6} parent=23 // pred_check
        %p410 = pneg %p59
      $region72: #{appnp_benx_forward.6} parent=23 // pred_check_branch
        %412 = sbr.rel (%p410) target = $region74
      $region73: #{appnp_benx_forward.6} parent=23 // pred_region
        _
      $region74: #{appnp_benx_forward.6} parent=23 // pred_fallthru
        _
    $region24: #{appnp_benx_forward.6} parent=5 // pred_fallthru
      _
    %p413 = scmp.le.s32.totalorder 2, %s8
    // Predicated region
    $region75: #{appnp_benx_forward.6} parent=5 // pred_check
      %p414 = pneg %p413
    $region76: #{appnp_benx_forward.6} parent=5 // pred_check_branch
      %416 = sbr.rel (%p414) target = $region78
    $region77: #{appnp_benx_forward.6} parent=5 // pred_region
      %s417 = ssub.s32 %s8, 2
    $region78: #{appnp_benx_forward.6} parent=5 // pred_fallthru
      _
  $region6: #{appnp_benx_forward.6} parent=0 // loop_footer
    %s12 = sadd.s32 1, %s8
  $region7: #{appnp_benx_forward.6} parent=0 // loop_footer_branch
    %7 = sbr.rel target = $region3
  $region8: #{appnp_benx_forward.6} parent=0 // loop_exit
    _
  %418 = vsyncmov [#allocation4]
  %s419 = vpop.sfrf %418
  %p420 = scmp.eq.s32.totalorder %s419, 0
  %p421 = pneg %p420
  %423 = shalt.err (%p421)

</llo_original>
